<compile_context>
chip_gen: v5e
topology: v5e:2x2
jax: 0.10.0
libtpu: 0.0.40
codegen_flags: <defaults>
</compile_context>

<pallas_src>
import jax
import jax.numpy as jnp
from jax.experimental import pallas as pl
from jax.experimental.pallas import tpu as pltpu

IN_FEATURES = 2048
HIDDEN = 256
N_CLASSES = 20      # multi-label head size (e.g. PASCAL VOC); any value works
LANE = 128
SUBLANE = 8
MAX_TB = 512        # batch tile cap: fits v5e 16 MiB scoped default & v7x 64 MiB VMEM


def _round_up(n, m):
    return ((n + m - 1) // m) * m


def _classifier_kernel(x_ref, w1_ref, b1_ref, w2_ref, b2_ref, o_ref):
    # x:  (TB, 2048) f32    w1: (2048, 256) bf16   b1: (1, 256) f32
    # w2: (256, Cp)  bf16   b2: (1, Cp)     f32    o:  (TB, Cp) f32
    x = x_ref[...].astype(jnp.bfloat16)
    h = jnp.dot(x, w1_ref[...], preferred_element_type=jnp.float32) + b1_ref[...]
    h = jnp.maximum(h, 0.0)  # ReLU
    out = jnp.dot(h.astype(jnp.bfloat16), w2_ref[...],
                  preferred_element_type=jnp.float32) + b2_ref[...]
    o_ref[...] = out.astype(o_ref.dtype)


def mlcnnet_classifier(x, w1t, b1r, w2t, b2r, n_classes):
    """Fused Linear(2048,256) -> ReLU -> Linear(256,C) Pallas kernel.

    Args (already layout-prepared, see prepare_params):
      x:    (B, 2048) f32 backbone features.
      w1t:  (2048, 256) bf16   b1r: (1, 256) f32
      w2t:  (256, Cp)  bf16    b2r: (1, Cp)  f32   (Cp = C padded to 128 lanes)
    Returns:
      (B, n_classes) f32 logits == relu(x @ W1.T + b1) @ W2.T + b2.
    """
    B = x.shape[0]
    Cp = w2t.shape[1]

    # Batch tile: multiple of 8 (sublane), capped for VMEM; pad B to a tile multiple.
    TB = min(MAX_TB, _round_up(max(B, 1), SUBLANE))
    B_pad = _round_up(B, TB)
    if B_pad != B:
        x = jnp.pad(x, ((0, B_pad - B), (0, 0)))
    grid = (B_pad // TB,)

    flops = 2 * B_pad * (IN_FEATURES * HIDDEN + HIDDEN * Cp)
    bytes_accessed = (B_pad * IN_FEATURES * 4        # x (f32)
                      + w1t.size * 2 + w2t.size * 2  # bf16 weights
                      + b1r.size * 4 + b2r.size * 4
                      + B_pad * Cp * 4)              # output (f32)

    out = pl.pallas_call(
        _classifier_kernel,
        out_shape=jax.ShapeDtypeStruct((B_pad, Cp), jnp.float32),
        grid=grid,
        in_specs=[
            pl.BlockSpec((TB, IN_FEATURES), lambda i: (i, 0)),       # x: tiled over batch
            pl.BlockSpec((IN_FEATURES, HIDDEN), lambda i: (0, 0)),   # w1: resident
            pl.BlockSpec((1, HIDDEN), lambda i: (0, 0)),             # b1: resident
            pl.BlockSpec((HIDDEN, Cp), lambda i: (0, 0)),            # w2: resident
            pl.BlockSpec((1, Cp), lambda i: (0, 0)),                 # b2: resident
        ],
        out_specs=pl.BlockSpec((TB, Cp), lambda i: (i, 0)),
        compiler_params=pltpu.CompilerParams(
            dimension_semantics=("parallel",),   # megacore-shard batch tiles on v7x
        ),
        cost_estimate=pl.CostEstimate(
            flops=flops, transcendentals=0, bytes_accessed=bytes_accessed),
    )(x, w1t, b1r, w2t, b2r)

    return out[:B, :n_classes]


def prepare_params(params):
    """One-time layout prep (outside the hot path): transpose to (in,out), cast the
    weights to bf16 for the MXU, and pad the output dim to a 128-lane multiple."""
    w1, b1, w2, b2 = params["w1"], params["b1"], params["w2"], params["b2"]
    C = w2.shape[0]
    Cp = max(LANE, _round_up(C, LANE))
    w1t = w1.T.astype(jnp.bfloat16)                                   # (2048, 256)
    b1r = b1.reshape(1, HIDDEN).astype(jnp.float32)                   # (1, 256)
    w2t = jnp.pad(w2.T, ((0, 0), (0, Cp - C))).astype(jnp.bfloat16)   # (256, Cp)
    b2r = jnp.pad(b2.reshape(1, C), ((0, 0), (0, Cp - C))).astype(jnp.float32)
    return {"w1t": w1t, "b1r": b1r, "w2t": w2t, "b2r": b2r, "n_classes": C}


def mlcnnet_forward(x_features, prepared):
    """MLCNNet.forward with the backbone already applied (x_features = backbone(x))."""
    return mlcnnet_classifier(
        x_features, prepared["w1t"], prepared["b1r"],
        prepared["w2t"], prepared["b2r"], prepared["n_classes"])


def init_params(key):
    """Deterministic init matching the nn.Linear shapes in MLCNNet.__init__."""
    k1, k2, k3, k4 = jax.random.split(key, 4)
    lim1 = 1.0 / jnp.sqrt(jnp.float32(IN_FEATURES))
    lim2 = 1.0 / jnp.sqrt(jnp.float32(HIDDEN))
    return {
        "w1": jax.random.uniform(k1, (HIDDEN, IN_FEATURES), jnp.float32, -lim1, lim1),
        "b1": jax.random.uniform(k2, (HIDDEN,), jnp.float32, -lim1, lim1),
        "w2": jax.random.uniform(k3, (N_CLASSES, HIDDEN), jnp.float32, -lim2, lim2),
        "b2": jax.random.uniform(k4, (N_CLASSES,), jnp.float32, -lim2, lim2),
    }


if __name__ == "__main__":
    key = jax.random.PRNGKey(0)
    kx, kp = jax.random.split(key)

    B = 2
    # Backbone output features (stand-in for backbone(x) on an NCHW image batch).
    x_feat = jax.random.normal(kx, (B, IN_FEATURES), dtype=jnp.float32)
    params = init_params(kp)
    prepared = prepare_params(params)   # one-time layout/bf16 prep, not per call

    out = mlcnnet_forward(x_feat, prepared)
    out = jax.block_until_ready(out)

    # Reference in plain JAX/f32 (same math as the PyTorch classifier).
    ref = jnp.maximum(x_feat @ params["w1"].T + params["b1"], 0.0) @ params["w2"].T + params["b2"]
    assert out.shape == (B, N_CLASSES)
    # bf16 weights/activations in the matmuls (f32 accumulation) -> looser tolerance.
    assert jnp.allclose(out, ref, atol=5e-2, rtol=5e-2), float(jnp.max(jnp.abs(out - ref)))

    print("KERNEL_OK")
</pallas_src>

<mosaic_0001>
module attributes {stable_mosaic.version = 11 : i64} {
  func.func @_classifier_kernel(%arg0: i32, %arg1: memref<8x2048xf32, #tpu.memory_space<vmem>>, %arg2: memref<2048x256xbf16, #tpu.memory_space<vmem>>, %arg3: memref<1x256xf32, #tpu.memory_space<vmem>>, %arg4: memref<256x128xbf16, #tpu.memory_space<vmem>>, %arg5: memref<1x128xf32, #tpu.memory_space<vmem>>, %arg6: memref<8x128xf32, #tpu.memory_space<vmem>>) attributes {dimension_semantics = [#tpu.dimension_semantics<parallel>], iteration_bounds = array<i64: 1>, scalar_prefetch = 0 : i64, scratch_operands = 0 : i64, tpu.core_type = #tpu.core_type<tc>, window_params = [{transform_indices = @transform_0, window_bounds = array<i64: 8, 2048>}, {pipeline_mode = #tpu.pipeline_mode<synchronous>, transform_indices = @transform_1, window_bounds = array<i64: 2048, 256>}, {pipeline_mode = #tpu.pipeline_mode<synchronous>, transform_indices = @transform_2, window_bounds = array<i64: 1, 256>}, {pipeline_mode = #tpu.pipeline_mode<synchronous>, transform_indices = @transform_3, window_bounds = array<i64: 256, 128>}, {pipeline_mode = #tpu.pipeline_mode<synchronous>, transform_indices = @transform_4, window_bounds = array<i64: 1, 128>}, {transform_indices = @transform_5, window_bounds = array<i64: 8, 128>}]} {
    %c0 = arith.constant 0 : index
    %c0_0 = arith.constant 0 : index
    %0 = vector.load %arg1[%c0, %c0_0] : memref<8x2048xf32, #tpu.memory_space<vmem>>, vector<8x2048xf32>
    %1 = arith.truncf %0 : vector<8x2048xf32> to vector<8x2048xbf16>
    %c0_1 = arith.constant 0 : index
    %c0_2 = arith.constant 0 : index
    %2 = vector.load %arg2[%c0_1, %c0_2] : memref<2048x256xbf16, #tpu.memory_space<vmem>>, vector<2048x256xbf16>
    %cst = arith.constant dense<0.000000e+00> : vector<8x256xf32>
    %3 = tpu.matmul %1, %2, %cst {dimension_numbers = #tpu.dot_dimension_numbers<[1], [0], [0], [1], [0, 0, 1, 1], [], []>} : vector<8x2048xbf16>, vector<2048x256xbf16>, vector<8x256xf32> -> vector<8x256xf32>
    %c0_3 = arith.constant 0 : index
    %c0_4 = arith.constant 0 : index
    %4 = vector.load %arg3[%c0_3, %c0_4] : memref<1x256xf32, #tpu.memory_space<vmem>>, vector<1x256xf32>
    %5 = vector.broadcast %4 : vector<1x256xf32> to vector<8x256xf32>
    %6 = arith.addf %3, %5 : vector<8x256xf32>
    %cst_5 = arith.constant 0.000000e+00 : f32
    %7 = vector.broadcast %cst_5 : f32 to vector<8x256xf32>
    %8 = arith.maximumf %6, %7 : vector<8x256xf32>
    %9 = arith.truncf %8 : vector<8x256xf32> to vector<8x256xbf16>
    %c0_6 = arith.constant 0 : index
    %c0_7 = arith.constant 0 : index
    %10 = vector.load %arg4[%c0_6, %c0_7] : memref<256x128xbf16, #tpu.memory_space<vmem>>, vector<256x128xbf16>
    %cst_8 = arith.constant dense<0.000000e+00> : vector<8x128xf32>
    %11 = tpu.matmul %9, %10, %cst_8 {dimension_numbers = #tpu.dot_dimension_numbers<[1], [0], [0], [1], [0, 0, 1, 1], [], []>} : vector<8x256xbf16>, vector<256x128xbf16>, vector<8x128xf32> -> vector<8x128xf32>
    %c0_9 = arith.constant 0 : index
    %c0_10 = arith.constant 0 : index
    %12 = vector.load %arg5[%c0_9, %c0_10] : memref<1x128xf32, #tpu.memory_space<vmem>>, vector<1x128xf32>
    %13 = vector.broadcast %12 : vector<1x128xf32> to vector<8x128xf32>
    %14 = arith.addf %11, %13 : vector<8x128xf32>
    %c0_11 = arith.constant 0 : index
    %c0_12 = arith.constant 0 : index
    %15 = vector.load %arg6[%c0_11, %c0_12] : memref<8x128xf32, #tpu.memory_space<vmem>>, vector<8x128xf32>
    tpu.vector_store %arg6[%c0_11, %c0_12], %14 {strides = array<i32>} : memref<8x128xf32, #tpu.memory_space<vmem>>, vector<8x128xf32>,
    return
  }
  func.func @transform_0(%arg0: i32) -> (i32, i32) {
    %c0_i32 = arith.constant 0 : i32
    %c0_i32_0 = arith.constant 0 : i32
    return %arg0, %c0_i32 : i32, i32
  }
  func.func @transform_1(%arg0: i32) -> (i32, i32) {
    %c0_i32 = arith.constant 0 : i32
    %c0_i32_0 = arith.constant 0 : i32
    %c0_i32_1 = arith.constant 0 : i32
    return %c0_i32, %c0_i32_0 : i32, i32
  }
  func.func @transform_2(%arg0: i32) -> (i32, i32) {
    %c0_i32 = arith.constant 0 : i32
    %c0_i32_0 = arith.constant 0 : i32
    %c0_i32_1 = arith.constant 0 : i32
    return %c0_i32, %c0_i32_0 : i32, i32
  }
  func.func @transform_3(%arg0: i32) -> (i32, i32) {
    %c0_i32 = arith.constant 0 : i32
    %c0_i32_0 = arith.constant 0 : i32
    %c0_i32_1 = arith.constant 0 : i32
    return %c0_i32, %c0_i32_0 : i32, i32
  }
  func.func @transform_4(%arg0: i32) -> (i32, i32) {
    %c0_i32 = arith.constant 0 : i32
    %c0_i32_0 = arith.constant 0 : i32
    %c0_i32_1 = arith.constant 0 : i32
    return %c0_i32, %c0_i32_0 : i32, i32
  }
  func.func @transform_5(%arg0: i32) -> (i32, i32) {
    %c0_i32 = arith.constant 0 : i32
    %c0_i32_0 = arith.constant 0 : i32
    return %arg0, %c0_i32 : i32, i32
  }
}

</mosaic_0001>

<llo_original>
// kernel: tpu_custom_call.1
$region0: #{tpu_custom_call.1}
  #allocation0 [shape = 'u32[]', space=smem, size = 0x4, offset = 0x4, fixed_abs, tag = 'smem constant byte address 0x4 - core index']
  #allocation1 [shape = 'u32[72,128]{1,0:T(1,128)}', space=vmem, size = 0x9000, scoped, tag = 'internal scratch']
  %s0 = inlined_call_operand.hbm [shape: f32[8,2048], index: 0, kind: input, shape index: {}]
  %s1 = inlined_call_operand.hbm [shape: bf16[2048,256], index: 1, kind: input, shape index: {}]
  %s2 = inlined_call_operand.hbm [shape: f32[1,256], index: 2, kind: input, shape index: {}]
  %s3 = inlined_call_operand.hbm [shape: bf16[256,128], index: 3, kind: input, shape index: {}]
  %s4 = inlined_call_operand.vmem [shape: f32[1,128], index: 4, kind: input, shape index: {}]
  %s5 = inlined_call_operand.hbm [shape: f32[8,128], index: 5, kind: output, shape index: {}]
  %s6 = sld [smem:[#allocation0]]
  $region46: #{tpu_custom_call.1} parent=0
    _
  %s8 = ssub.s32 1, %s6
  %s9 = scalar_select 0, %s8, %s6
  $region1: #{tpu_custom_call.1} parent=0
    #allocation2 [shape = 'u8[65536]{0}', space=vmem, size = 0x10000, scoped, tag = 'input window, operand 0, single buffered']
    #allocation3 [shape = 's32[1]{0}', space=sflag, size = 0x4, scoped, tag = 'scoped memory for tpu_custom_call.1']
    #allocation4 [shape = 's32[1]{0}', space=sflag, size = 0x4, scoped, tag = 'scoped memory for tpu_custom_call.1']
    #allocation5 [shape = 'u8[1048576]{0}', space=vmem, size = 0x100000, scoped, tag = 'input window, operand 1, single buffered']
    #allocation6 [shape = 's32[1]{0}', space=sflag, size = 0x4, scoped, tag = 'scoped memory for tpu_custom_call.1']
    #allocation7 [shape = 'u8[1024]{0}', space=vmem, size = 0x400, scoped, tag = 'input window, operand 2, single buffered']
    #allocation8 [shape = 'u8[65536]{0}', space=vmem, size = 0x10000, scoped, tag = 'input window, operand 3, single buffered']
    #allocation9 [shape = 's32[1]{0}', space=sflag, size = 0x4, scoped, tag = 'scoped memory for tpu_custom_call.1']
    #allocation10 [shape = 'u8[4096]{0}', space=vmem, size = 0x1000, scoped, tag = 'output window, operand 0, single buffered']
    %10 = vsyncpa [#allocation3], 0
    %11 = vsyncpa [#allocation6], 0
    %12 = vsyncpa [#allocation9], 0
    %13 = vsyncpa [#allocation4], 0
    // Predicated region
    $region2: #{tpu_custom_call.1} parent=1 // pred_check
      _
    $region3: #{tpu_custom_call.1} parent=1 // pred_check_branch
      %15 = sbr.rel (0) target = $region5
    $region4: #{tpu_custom_call.1} parent=1 // pred_region
      %17 = vsyncadd [#allocation3], 0
      %s19 = sshll.u32 %s0, 4
      %s20 = int_to_ptr.hbm [resolvable:$true] %s19
      %s21 = sshll.u32 [#allocation2], 4
      %s22 = int_to_ptr.vmem [resolvable:$true] %s21
      %24 = dma.hbm_to_vmem [thread:$0]  %s20, 2048, %s22, [#allocation3]
    $region5: #{tpu_custom_call.1} parent=1 // pred_fallthru
      _
    // Predicated region
    $region6: #{tpu_custom_call.1} parent=1 // pred_check
      _
    $region7: #{tpu_custom_call.1} parent=1 // pred_check_branch
      %26 = sbr.rel (0) target = $region9
    $region8: #{tpu_custom_call.1} parent=1 // pred_region
      %28 = vsyncadd [#allocation6], 0
      %s29 = sshll.u32 %s1, 4
      %s30 = int_to_ptr.hbm [resolvable:$true] %s29
      %s31 = sshll.u32 [#allocation5], 4
      %s32 = int_to_ptr.vmem [resolvable:$true] %s31
      %37 = dma.hbm_to_vmem [thread:$0]  %s30, 32768, %s32, [#allocation6], 128, 128, 8
    $region9: #{tpu_custom_call.1} parent=1 // pred_fallthru
      _
    // Predicated region
    $region10: #{tpu_custom_call.1} parent=1 // pred_check
      _
    $region11: #{tpu_custom_call.1} parent=1 // pred_check_branch
      %39 = sbr.rel (0) target = $region13
    $region12: #{tpu_custom_call.1} parent=1 // pred_region
      %41 = vsyncadd [#allocation6], 0
      %s43 = sshll.u32 %s2, 4
      %s44 = int_to_ptr.hbm [resolvable:$true] %s43
      %s45 = sshll.u32 [#allocation7], 4
      %s46 = int_to_ptr.vmem [resolvable:$true] %s45
      %48 = dma.hbm_to_vmem [thread:$0]  %s44, 32, %s46, [#allocation6]
    $region13: #{tpu_custom_call.1} parent=1 // pred_fallthru
      _
    // Predicated region
    $region14: #{tpu_custom_call.1} parent=1 // pred_check
      _
    $region15: #{tpu_custom_call.1} parent=1 // pred_check_branch
      %50 = sbr.rel (0) target = $region17
    $region16: #{tpu_custom_call.1} parent=1 // pred_region
      %52 = vsyncadd [#allocation9], 0
      %s53 = sshll.u32 %s3, 4
      %s54 = int_to_ptr.hbm [resolvable:$true] %s53
      %s55 = sshll.u32 [#allocation8], 4
      %s56 = int_to_ptr.vmem [resolvable:$true] %s55
      %61 = dma.hbm_to_vmem [thread:$0]  %s54, 2048, %s56, [#allocation9], 64, 64, 4
    $region17: #{tpu_custom_call.1} parent=1 // pred_fallthru
      _
    // Predicated region
    $region18: #{tpu_custom_call.1} parent=1 // pred_check
      _
    $region19: #{tpu_custom_call.1} parent=1 // pred_check_branch
      %63 = sbr.rel (0) target = $region21
    $region20: #{tpu_custom_call.1} parent=1 // pred_region
      _
    $region21: #{tpu_custom_call.1} parent=1 // pred_fallthru
      _
    // Predicated region
    $region22: #{tpu_custom_call.1} parent=1 // pred_check
      _
    $region23: #{tpu_custom_call.1} parent=1 // pred_check_branch
      %65 = sbr.rel (0) target = $region25
    $region24: #{tpu_custom_call.1} parent=1 // pred_region
      %67 = dma.done [#allocation3], 2048
    $region25: #{tpu_custom_call.1} parent=1 // pred_fallthru
      _
    // Predicated region
    $region26: #{tpu_custom_call.1} parent=1 // pred_check
      _
    $region27: #{tpu_custom_call.1} parent=1 // pred_check_branch
      %69 = sbr.rel (0) target = $region29
    $region28: #{tpu_custom_call.1} parent=1 // pred_region
      %71 = dma.done [#allocation6], 32768
    $region29: #{tpu_custom_call.1} parent=1 // pred_fallthru
      _
    // Predicated region
    $region30: #{tpu_custom_call.1} parent=1 // pred_check
      _
    $region31: #{tpu_custom_call.1} parent=1 // pred_check_branch
      %73 = sbr.rel (0) target = $region33
    $region32: #{tpu_custom_call.1} parent=1 // pred_region
      %75 = dma.done [#allocation6], 32
    $region33: #{tpu_custom_call.1} parent=1 // pred_fallthru
      _
    // Predicated region
    $region34: #{tpu_custom_call.1} parent=1 // pred_check
      _
    $region35: #{tpu_custom_call.1} parent=1 // pred_check_branch
      %77 = sbr.rel (0) target = $region37
    $region36: #{tpu_custom_call.1} parent=1 // pred_region
      %79 = dma.done [#allocation9], 2048
    $region37: #{tpu_custom_call.1} parent=1 // pred_fallthru
      _
    %v80 = vld [vmem:[#allocation2] sm:$0xff]
    %v81 = vld [vmem:[#allocation2 + $0x8] sm:$0xff]
    %v82 = vld [vmem:[#allocation2 + $0x10] sm:$0xff]
    %v83 = vld [vmem:[#allocation2 + $0x18] sm:$0xff]
    %v84 = vld [vmem:[#allocation2 + $0x20] sm:$0xff]
    %v85 = vld [vmem:[#allocation2 + $0x28] sm:$0xff]
    %v86 = vld [vmem:[#allocation2 + $0x30] sm:$0xff]
    %v87 = vld [vmem:[#allocation2 + $0x38] sm:$0xff]
    %v88 = vld [vmem:[#allocation2 + $0x40] sm:$0xff]
    %v89 = vld [vmem:[#allocation2 + $0x48] sm:$0xff]
    %v90 = vld [vmem:[#allocation2 + $0x50] sm:$0xff]
    %v91 = vld [vmem:[#allocation2 + $0x58] sm:$0xff]
    %v92 = vld [vmem:[#allocation2 + $0x60] sm:$0xff]
    %v93 = vld [vmem:[#allocation2 + $0x68] sm:$0xff]
    %v94 = vld [vmem:[#allocation2 + $0x70] sm:$0xff]
    %v95 = vld [vmem:[#allocation2 + $0x78] sm:$0xff]
    %v96 = vpack.c.bf16 %v80, %v80
    %v97 = vpack.c.bf16 %v81, %v81
    %v98 = vpack.c.bf16 %v82, %v82
    %v99 = vpack.c.bf16 %v83, %v83
    %v100 = vpack.c.bf16 %v84, %v84
    %v101 = vpack.c.bf16 %v85, %v85
    %v102 = vpack.c.bf16 %v86, %v86
    %v103 = vpack.c.bf16 %v87, %v87
    %v104 = vpack.c.bf16 %v88, %v88
    %v105 = vpack.c.bf16 %v89, %v89
    %v106 = vpack.c.bf16 %v90, %v90
    %v107 = vpack.c.bf16 %v91, %v91
    %v108 = vpack.c.bf16 %v92, %v92
    %v109 = vpack.c.bf16 %v93, %v93
    %v110 = vpack.c.bf16 %v94, %v94
    %v111 = vpack.c.bf16 %v95, %v95
    %v112 = vld [vmem:[#allocation5] sm:$0xff]
    %v113 = vld [vmem:[#allocation5 + $0x8] sm:$0xff]
    %v114 = vld [vmem:[#allocation5 + $0x10] sm:$0xff]
    %v115 = vld [vmem:[#allocation5 + $0x18] sm:$0xff]
    %v116 = vld [vmem:[#allocation5 + $0x20] sm:$0xff]
    %v117 = vld [vmem:[#allocation5 + $0x28] sm:$0xff]
    %v118 = vld [vmem:[#allocation5 + $0x30] sm:$0xff]
    %v119 = vld [vmem:[#allocation5 + $0x38] sm:$0xff]
    %v120 = vld [vmem:[#allocation5 + $0x40] sm:$0xff]
    %v121 = vld [vmem:[#allocation5 + $0x48] sm:$0xff]
    %v122 = vld [vmem:[#allocation5 + $0x50] sm:$0xff]
    %v123 = vld [vmem:[#allocation5 + $0x58] sm:$0xff]
    %v124 = vld [vmem:[#allocation5 + $0x60] sm:$0xff]
    %v125 = vld [vmem:[#allocation5 + $0x68] sm:$0xff]
    %v126 = vld [vmem:[#allocation5 + $0x70] sm:$0xff]
    %v127 = vld [vmem:[#allocation5 + $0x78] sm:$0xff]
    %v128 = vld [vmem:[#allocation5 + $0x80] sm:$0xff]
    %v129 = vld [vmem:[#allocation5 + $0x88] sm:$0xff]
    %v130 = vld [vmem:[#allocation5 + $0x90] sm:$0xff]
    %v131 = vld [vmem:[#allocation5 + $0x98] sm:$0xff]
    %v132 = vld [vmem:[#allocation5 + $0xa0] sm:$0xff]
    %v133 = vld [vmem:[#allocation5 + $0xa8] sm:$0xff]
    %v134 = vld [vmem:[#allocation5 + $0xb0] sm:$0xff]
    %v135 = vld [vmem:[#allocation5 + $0xb8] sm:$0xff]
    %v136 = vld [vmem:[#allocation5 + $0xc0] sm:$0xff]
    %v137 = vld [vmem:[#allocation5 + $0xc8] sm:$0xff]
    %v138 = vld [vmem:[#allocation5 + $0xd0] sm:$0xff]
    %v139 = vld [vmem:[#allocation5 + $0xd8] sm:$0xff]
    %v140 = vld [vmem:[#allocation5 + $0xe0] sm:$0xff]
    %v141 = vld [vmem:[#allocation5 + $0xe8] sm:$0xff]
    %v142 = vld [vmem:[#allocation5 + $0xf0] sm:$0xff]
    %v143 = vld [vmem:[#allocation5 + $0xf8] sm:$0xff]
    %v144 = vld [vmem:[#allocation5 + $0x100] sm:$0xff]
    %v145 = vld [vmem:[#allocation5 + $0x108] sm:$0xff]
    %v146 = vld [vmem:[#allocation5 + $0x110] sm:$0xff]
    %v147 = vld [vmem:[#allocation5 + $0x118] sm:$0xff]
    %v148 = vld [vmem:[#allocation5 + $0x120] sm:$0xff]
    %v149 = vld [vmem:[#allocation5 + $0x128] sm:$0xff]
    %v150 = vld [vmem:[#allocation5 + $0x130] sm:$0xff]
    %v151 = vld [vmem:[#allocation5 + $0x138] sm:$0xff]
    %v152 = vld [vmem:[#allocation5 + $0x140] sm:$0xff]
    %v153 = vld [vmem:[#allocation5 + $0x148] sm:$0xff]
    %v154 = vld [vmem:[#allocation5 + $0x150] sm:$0xff]
    %v155 = vld [vmem:[#allocation5 + $0x158] sm:$0xff]
    %v156 = vld [vmem:[#allocation5 + $0x160] sm:$0xff]
    %v157 = vld [vmem:[#allocation5 + $0x168] sm:$0xff]
    %v158 = vld [vmem:[#allocation5 + $0x170] sm:$0xff]
    %v159 = vld [vmem:[#allocation5 + $0x178] sm:$0xff]
    %v160 = vld [vmem:[#allocation5 + $0x180] sm:$0xff]
    %v161 = vld [vmem:[#allocation5 + $0x188] sm:$0xff]
    %v162 = vld [vmem:[#allocation5 + $0x190] sm:$0xff]
    %v163 = vld [vmem:[#allocation5 + $0x198] sm:$0xff]
    %v164 = vld [vmem:[#allocation5 + $0x1a0] sm:$0xff]
    %v165 = vld [vmem:[#allocation5 + $0x1a8] sm:$0xff]
    %v166 = vld [vmem:[#allocation5 + $0x1b0] sm:$0xff]
    %v167 = vld [vmem:[#allocation5 + $0x1b8] sm:$0xff]
    %v168 = vld [vmem:[#allocation5 + $0x1c0] sm:$0xff]
    %v169 = vld [vmem:[#allocation5 + $0x1c8] sm:$0xff]
    %v170 = vld [vmem:[#allocation5 + $0x1d0] sm:$0xff]
    %v171 = vld [vmem:[#allocation5 + $0x1d8] sm:$0xff]
    %v172 = vld [vmem:[#allocation5 + $0x1e0] sm:$0xff]
    %v173 = vld [vmem:[#allocation5 + $0x1e8] sm:$0xff]
    %v174 = vld [vmem:[#allocation5 + $0x1f0] sm:$0xff]
    %v175 = vld [vmem:[#allocation5 + $0x1f8] sm:$0xff]
    %v176 = vld [vmem:[#allocation5 + $0x200] sm:$0xff]
    %v177 = vld [vmem:[#allocation5 + $0x208] sm:$0xff]
    %v178 = vld [vmem:[#allocation5 + $0x210] sm:$0xff]
    %v179 = vld [vmem:[#allocation5 + $0x218] sm:$0xff]
    %v180 = vld [vmem:[#allocation5 + $0x220] sm:$0xff]
    %v181 = vld [vmem:[#allocation5 + $0x228] sm:$0xff]
    %v182 = vld [vmem:[#allocation5 + $0x230] sm:$0xff]
    %v183 = vld [vmem:[#allocation5 + $0x238] sm:$0xff]
    %v184 = vld [vmem:[#allocation5 + $0x240] sm:$0xff]
    %v185 = vld [vmem:[#allocation5 + $0x248] sm:$0xff]
    %v186 = vld [vmem:[#allocation5 + $0x250] sm:$0xff]
    %v187 = vld [vmem:[#allocation5 + $0x258] sm:$0xff]
    %v188 = vld [vmem:[#allocation5 + $0x260] sm:$0xff]
    %v189 = vld [vmem:[#allocation5 + $0x268] sm:$0xff]
    %v190 = vld [vmem:[#allocation5 + $0x270] sm:$0xff]
    %v191 = vld [vmem:[#allocation5 + $0x278] sm:$0xff]
    %v192 = vld [vmem:[#allocation5 + $0x280] sm:$0xff]
    %v193 = vld [vmem:[#allocation5 + $0x288] sm:$0xff]
    %v194 = vld [vmem:[#allocation5 + $0x290] sm:$0xff]
    %v195 = vld [vmem:[#allocation5 + $0x298] sm:$0xff]
    %v196 = vld [vmem:[#allocation5 + $0x2a0] sm:$0xff]
    %v197 = vld [vmem:[#allocation5 + $0x2a8] sm:$0xff]
    %v198 = vld [vmem:[#allocation5 + $0x2b0] sm:$0xff]
    %v199 = vld [vmem:[#allocation5 + $0x2b8] sm:$0xff]
    %v200 = vld [vmem:[#allocation5 + $0x2c0] sm:$0xff]
    %v201 = vld [vmem:[#allocation5 + $0x2c8] sm:$0xff]
    %v202 = vld [vmem:[#allocation5 + $0x2d0] sm:$0xff]
    %v203 = vld [vmem:[#allocation5 + $0x2d8] sm:$0xff]
    %v204 = vld [vmem:[#allocation5 + $0x2e0] sm:$0xff]
    %v205 = vld [vmem:[#allocation5 + $0x2e8] sm:$0xff]
    %v206 = vld [vmem:[#allocation5 + $0x2f0] sm:$0xff]
    %v207 = vld [vmem:[#allocation5 + $0x2f8] sm:$0xff]
    %v208 = vld [vmem:[#allocation5 + $0x300] sm:$0xff]
    %v209 = vld [vmem:[#allocation5 + $0x308] sm:$0xff]
    %v210 = vld [vmem:[#allocation5 + $0x310] sm:$0xff]
    %v211 = vld [vmem:[#allocation5 + $0x318] sm:$0xff]
    %v212 = vld [vmem:[#allocation5 + $0x320] sm:$0xff]
    %v213 = vld [vmem:[#allocation5 + $0x328] sm:$0xff]
    %v214 = vld [vmem:[#allocation5 + $0x330] sm:$0xff]
    %v215 = vld [vmem:[#allocation5 + $0x338] sm:$0xff]
    %v216 = vld [vmem:[#allocation5 + $0x340] sm:$0xff]
    %v217 = vld [vmem:[#allocation5 + $0x348] sm:$0xff]
    %v218 = vld [vmem:[#allocation5 + $0x350] sm:$0xff]
    %v219 = vld [vmem:[#allocation5 + $0x358] sm:$0xff]
    %v220 = vld [vmem:[#allocation5 + $0x360] sm:$0xff]
    %v221 = vld [vmem:[#allocation5 + $0x368] sm:$0xff]
    %v222 = vld [vmem:[#allocation5 + $0x370] sm:$0xff]
    %v223 = vld [vmem:[#allocation5 + $0x378] sm:$0xff]
    %v224 = vld [vmem:[#allocation5 + $0x380] sm:$0xff]
    %v225 = vld [vmem:[#allocation5 + $0x388] sm:$0xff]
    %v226 = vld [vmem:[#allocation5 + $0x390] sm:$0xff]
    %v227 = vld [vmem:[#allocation5 + $0x398] sm:$0xff]
    %v228 = vld [vmem:[#allocation5 + $0x3a0] sm:$0xff]
    %v229 = vld [vmem:[#allocation5 + $0x3a8] sm:$0xff]
    %v230 = vld [vmem:[#allocation5 + $0x3b0] sm:$0xff]
    %v231 = vld [vmem:[#allocation5 + $0x3b8] sm:$0xff]
    %v232 = vld [vmem:[#allocation5 + $0x3c0] sm:$0xff]
    %v233 = vld [vmem:[#allocation5 + $0x3c8] sm:$0xff]
    %v234 = vld [vmem:[#allocation5 + $0x3d0] sm:$0xff]
    %v235 = vld [vmem:[#allocation5 + $0x3d8] sm:$0xff]
    %v236 = vld [vmem:[#allocation5 + $0x3e0] sm:$0xff]
    %v237 = vld [vmem:[#allocation5 + $0x3e8] sm:$0xff]
    %v238 = vld [vmem:[#allocation5 + $0x3f0] sm:$0xff]
    %v239 = vld [vmem:[#allocation5 + $0x3f8] sm:$0xff]
    %v240 = vld [vmem:[#allocation5 + $0x400] sm:$0xff]
    %v241 = vld [vmem:[#allocation5 + $0x408] sm:$0xff]
    %v242 = vld [vmem:[#allocation5 + $0x410] sm:$0xff]
    %v243 = vld [vmem:[#allocation5 + $0x418] sm:$0xff]
    %v244 = vld [vmem:[#allocation5 + $0x420] sm:$0xff]
    %v245 = vld [vmem:[#allocation5 + $0x428] sm:$0xff]
    %v246 = vld [vmem:[#allocation5 + $0x430] sm:$0xff]
    %v247 = vld [vmem:[#allocation5 + $0x438] sm:$0xff]
    %v248 = vld [vmem:[#allocation5 + $0x440] sm:$0xff]
    %v249 = vld [vmem:[#allocation5 + $0x448] sm:$0xff]
    %v250 = vld [vmem:[#allocation5 + $0x450] sm:$0xff]
    %v251 = vld [vmem:[#allocation5 + $0x458] sm:$0xff]
    %v252 = vld [vmem:[#allocation5 + $0x460] sm:$0xff]
    %v253 = vld [vmem:[#allocation5 + $0x468] sm:$0xff]
    %v254 = vld [vmem:[#allocation5 + $0x470] sm:$0xff]
    %v255 = vld [vmem:[#allocation5 + $0x478] sm:$0xff]
    %v256 = vld [vmem:[#allocation5 + $0x480] sm:$0xff]
    %v257 = vld [vmem:[#allocation5 + $0x488] sm:$0xff]
    %v258 = vld [vmem:[#allocation5 + $0x490] sm:$0xff]
    %v259 = vld [vmem:[#allocation5 + $0x498] sm:$0xff]
    %v260 = vld [vmem:[#allocation5 + $0x4a0] sm:$0xff]
    %v261 = vld [vmem:[#allocation5 + $0x4a8] sm:$0xff]
    %v262 = vld [vmem:[#allocation5 + $0x4b0] sm:$0xff]
    %v263 = vld [vmem:[#allocation5 + $0x4b8] sm:$0xff]
    %v264 = vld [vmem:[#allocation5 + $0x4c0] sm:$0xff]
    %v265 = vld [vmem:[#allocation5 + $0x4c8] sm:$0xff]
    %v266 = vld [vmem:[#allocation5 + $0x4d0] sm:$0xff]
    %v267 = vld [vmem:[#allocation5 + $0x4d8] sm:$0xff]
    %v268 = vld [vmem:[#allocation5 + $0x4e0] sm:$0xff]
    %v269 = vld [vmem:[#allocation5 + $0x4e8] sm:$0xff]
    %v270 = vld [vmem:[#allocation5 + $0x4f0] sm:$0xff]
    %v271 = vld [vmem:[#allocation5 + $0x4f8] sm:$0xff]
    %v272 = vld [vmem:[#allocation5 + $0x500] sm:$0xff]
    %v273 = vld [vmem:[#allocation5 + $0x508] sm:$0xff]
    %v274 = vld [vmem:[#allocation5 + $0x510] sm:$0xff]
    %v275 = vld [vmem:[#allocation5 + $0x518] sm:$0xff]
    %v276 = vld [vmem:[#allocation5 + $0x520] sm:$0xff]
    %v277 = vld [vmem:[#allocation5 + $0x528] sm:$0xff]
    %v278 = vld [vmem:[#allocation5 + $0x530] sm:$0xff]
    %v279 = vld [vmem:[#allocation5 + $0x538] sm:$0xff]
    %v280 = vld [vmem:[#allocation5 + $0x540] sm:$0xff]
    %v281 = vld [vmem:[#allocation5 + $0x548] sm:$0xff]
    %v282 = vld [vmem:[#allocation5 + $0x550] sm:$0xff]
    %v283 = vld [vmem:[#allocation5 + $0x558] sm:$0xff]
    %v284 = vld [vmem:[#allocation5 + $0x560] sm:$0xff]
    %v285 = vld [vmem:[#allocation5 + $0x568] sm:$0xff]
    %v286 = vld [vmem:[#allocation5 + $0x570] sm:$0xff]
    %v287 = vld [vmem:[#allocation5 + $0x578] sm:$0xff]
    %v288 = vld [vmem:[#allocation5 + $0x580] sm:$0xff]
    %v289 = vld [vmem:[#allocation5 + $0x588] sm:$0xff]
    %v290 = vld [vmem:[#allocation5 + $0x590] sm:$0xff]
    %v291 = vld [vmem:[#allocation5 + $0x598] sm:$0xff]
    %v292 = vld [vmem:[#allocation5 + $0x5a0] sm:$0xff]
    %v293 = vld [vmem:[#allocation5 + $0x5a8] sm:$0xff]
    %v294 = vld [vmem:[#allocation5 + $0x5b0] sm:$0xff]
    %v295 = vld [vmem:[#allocation5 + $0x5b8] sm:$0xff]
    %v296 = vld [vmem:[#allocation5 + $0x5c0] sm:$0xff]
    %v297 = vld [vmem:[#allocation5 + $0x5c8] sm:$0xff]
    %v298 = vld [vmem:[#allocation5 + $0x5d0] sm:$0xff]
    %v299 = vld [vmem:[#allocation5 + $0x5d8] sm:$0xff]
    %v300 = vld [vmem:[#allocation5 + $0x5e0] sm:$0xff]
    %v301 = vld [vmem:[#allocation5 + $0x5e8] sm:$0xff]
    %v302 = vld [vmem:[#allocation5 + $0x5f0] sm:$0xff]
    %v303 = vld [vmem:[#allocation5 + $0x5f8] sm:$0xff]
    %v304 = vld [vmem:[#allocation5 + $0x600] sm:$0xff]
    %v305 = vld [vmem:[#allocation5 + $0x608] sm:$0xff]
    %v306 = vld [vmem:[#allocation5 + $0x610] sm:$0xff]
    %v307 = vld [vmem:[#allocation5 + $0x618] sm:$0xff]
    %v308 = vld [vmem:[#allocation5 + $0x620] sm:$0xff]
    %v309 = vld [vmem:[#allocation5 + $0x628] sm:$0xff]
    %v310 = vld [vmem:[#allocation5 + $0x630] sm:$0xff]
    %v311 = vld [vmem:[#allocation5 + $0x638] sm:$0xff]
    %v312 = vld [vmem:[#allocation5 + $0x640] sm:$0xff]
    %v313 = vld [vmem:[#allocation5 + $0x648] sm:$0xff]
    %v314 = vld [vmem:[#allocation5 + $0x650] sm:$0xff]
    %v315 = vld [vmem:[#allocation5 + $0x658] sm:$0xff]
    %v316 = vld [vmem:[#allocation5 + $0x660] sm:$0xff]
    %v317 = vld [vmem:[#allocation5 + $0x668] sm:$0xff]
    %v318 = vld [vmem:[#allocation5 + $0x670] sm:$0xff]
    %v319 = vld [vmem:[#allocation5 + $0x678] sm:$0xff]
    %v320 = vld [vmem:[#allocation5 + $0x680] sm:$0xff]
    %v321 = vld [vmem:[#allocation5 + $0x688] sm:$0xff]
    %v322 = vld [vmem:[#allocation5 + $0x690] sm:$0xff]
    %v323 = vld [vmem:[#allocation5 + $0x698] sm:$0xff]
    %v324 = vld [vmem:[#allocation5 + $0x6a0] sm:$0xff]
    %v325 = vld [vmem:[#allocation5 + $0x6a8] sm:$0xff]
    %v326 = vld [vmem:[#allocation5 + $0x6b0] sm:$0xff]
    %v327 = vld [vmem:[#allocation5 + $0x6b8] sm:$0xff]
    %v328 = vld [vmem:[#allocation5 + $0x6c0] sm:$0xff]
    %v329 = vld [vmem:[#allocation5 + $0x6c8] sm:$0xff]
    %v330 = vld [vmem:[#allocation5 + $0x6d0] sm:$0xff]
    %v331 = vld [vmem:[#allocation5 + $0x6d8] sm:$0xff]
    %v332 = vld [vmem:[#allocation5 + $0x6e0] sm:$0xff]
    %v333 = vld [vmem:[#allocation5 + $0x6e8] sm:$0xff]
    %v334 = vld [vmem:[#allocation5 + $0x6f0] sm:$0xff]
    %v335 = vld [vmem:[#allocation5 + $0x6f8] sm:$0xff]
    %v336 = vld [vmem:[#allocation5 + $0x700] sm:$0xff]
    %v337 = vld [vmem:[#allocation5 + $0x708] sm:$0xff]
    %v338 = vld [vmem:[#allocation5 + $0x710] sm:$0xff]
    %v339 = vld [vmem:[#allocation5 + $0x718] sm:$0xff]
    %v340 = vld [vmem:[#allocation5 + $0x720] sm:$0xff]
    %v341 = vld [vmem:[#allocation5 + $0x728] sm:$0xff]
    %v342 = vld [vmem:[#allocation5 + $0x730] sm:$0xff]
    %v343 = vld [vmem:[#allocation5 + $0x738] sm:$0xff]
    %v344 = vld [vmem:[#allocation5 + $0x740] sm:$0xff]
    %v345 = vld [vmem:[#allocation5 + $0x748] sm:$0xff]
    %v346 = vld [vmem:[#allocation5 + $0x750] sm:$0xff]
    %v347 = vld [vmem:[#allocation5 + $0x758] sm:$0xff]
    %v348 = vld [vmem:[#allocation5 + $0x760] sm:$0xff]
    %v349 = vld [vmem:[#allocation5 + $0x768] sm:$0xff]
    %v350 = vld [vmem:[#allocation5 + $0x770] sm:$0xff]
    %v351 = vld [vmem:[#allocation5 + $0x778] sm:$0xff]
    %v352 = vld [vmem:[#allocation5 + $0x780] sm:$0xff]
    %v353 = vld [vmem:[#allocation5 + $0x788] sm:$0xff]
    %v354 = vld [vmem:[#allocation5 + $0x790] sm:$0xff]
    %v355 = vld [vmem:[#allocation5 + $0x798] sm:$0xff]
    %v356 = vld [vmem:[#allocation5 + $0x7a0] sm:$0xff]
    %v357 = vld [vmem:[#allocation5 + $0x7a8] sm:$0xff]
    %v358 = vld [vmem:[#allocation5 + $0x7b0] sm:$0xff]
    %v359 = vld [vmem:[#allocation5 + $0x7b8] sm:$0xff]
    %v360 = vld [vmem:[#allocation5 + $0x7c0] sm:$0xff]
    %v361 = vld [vmem:[#allocation5 + $0x7c8] sm:$0xff]
    %v362 = vld [vmem:[#allocation5 + $0x7d0] sm:$0xff]
    %v363 = vld [vmem:[#allocation5 + $0x7d8] sm:$0xff]
    %v364 = vld [vmem:[#allocation5 + $0x7e0] sm:$0xff]
    %v365 = vld [vmem:[#allocation5 + $0x7e8] sm:$0xff]
    %v366 = vld [vmem:[#allocation5 + $0x7f0] sm:$0xff]
    %v367 = vld [vmem:[#allocation5 + $0x7f8] sm:$0xff]
    %v368 = vld [vmem:[#allocation7] sm:$0x3]
    %v370 = vperm.slane %v368, 0
    %v371 = vperm.slane %v368, 1
    %v630 = vunpack.c.l.b16 %v112
    %v631 = vunpack.c.h.b16 %v112
    %v632 = vunpack.c.l.b16 %v113
    %v633 = vunpack.c.h.b16 %v113
    %v634 = vunpack.c.l.b16 %v114
    %v635 = vunpack.c.h.b16 %v114
    %v636 = vunpack.c.l.b16 %v115
    %v637 = vunpack.c.h.b16 %v115
    %v638 = vunpack.c.l.b16 %v116
    %v639 = vunpack.c.h.b16 %v116
    %v640 = vunpack.c.l.b16 %v117
    %v641 = vunpack.c.h.b16 %v117
    %v642 = vunpack.c.l.b16 %v118
    %v643 = vunpack.c.h.b16 %v118
    %v644 = vunpack.c.l.b16 %v119
    %v645 = vunpack.c.h.b16 %v119
    %v646 = vunpack.c.l.b16 %v120
    %v647 = vunpack.c.h.b16 %v120
    %v648 = vunpack.c.l.b16 %v121
    %v649 = vunpack.c.h.b16 %v121
    %v650 = vunpack.c.l.b16 %v122
    %v651 = vunpack.c.h.b16 %v122
    %v652 = vunpack.c.l.b16 %v123
    %v653 = vunpack.c.h.b16 %v123
    %v654 = vunpack.c.l.b16 %v124
    %v655 = vunpack.c.h.b16 %v124
    %v656 = vunpack.c.l.b16 %v125
    %v657 = vunpack.c.h.b16 %v125
    %v658 = vunpack.c.l.b16 %v126
    %v659 = vunpack.c.h.b16 %v126
    %v660 = vunpack.c.l.b16 %v127
    %v661 = vunpack.c.h.b16 %v127
    %v662 = vunpack.c.l.b16 %v128
    %v663 = vunpack.c.h.b16 %v128
    %v664 = vunpack.c.l.b16 %v129
    %v665 = vunpack.c.h.b16 %v129
    %v666 = vunpack.c.l.b16 %v130
    %v667 = vunpack.c.h.b16 %v130
    %v668 = vunpack.c.l.b16 %v131
    %v669 = vunpack.c.h.b16 %v131
    %v670 = vunpack.c.l.b16 %v132
    %v671 = vunpack.c.h.b16 %v132
    %v672 = vunpack.c.l.b16 %v133
    %v673 = vunpack.c.h.b16 %v133
    %v674 = vunpack.c.l.b16 %v134
    %v675 = vunpack.c.h.b16 %v134
    %v676 = vunpack.c.l.b16 %v135
    %v677 = vunpack.c.h.b16 %v135
    %v678 = vunpack.c.l.b16 %v136
    %v679 = vunpack.c.h.b16 %v136
    %v680 = vunpack.c.l.b16 %v137
    %v681 = vunpack.c.h.b16 %v137
    %v682 = vunpack.c.l.b16 %v138
    %v683 = vunpack.c.h.b16 %v138
    %v684 = vunpack.c.l.b16 %v139
    %v685 = vunpack.c.h.b16 %v139
    %v686 = vunpack.c.l.b16 %v140
    %v687 = vunpack.c.h.b16 %v140
    %v688 = vunpack.c.l.b16 %v141
    %v689 = vunpack.c.h.b16 %v141
    %v690 = vunpack.c.l.b16 %v142
    %v691 = vunpack.c.h.b16 %v142
    %v692 = vunpack.c.l.b16 %v143
    %v693 = vunpack.c.h.b16 %v143
    %v694 = vunpack.c.l.b16 %v144
    %v695 = vunpack.c.h.b16 %v144
    %v696 = vunpack.c.l.b16 %v145
    %v697 = vunpack.c.h.b16 %v145
    %v698 = vunpack.c.l.b16 %v146
    %v699 = vunpack.c.h.b16 %v146
    %v700 = vunpack.c.l.b16 %v147
    %v701 = vunpack.c.h.b16 %v147
    %v702 = vunpack.c.l.b16 %v148
    %v703 = vunpack.c.h.b16 %v148
    %v704 = vunpack.c.l.b16 %v149
    %v705 = vunpack.c.h.b16 %v149
    %v706 = vunpack.c.l.b16 %v150
    %v707 = vunpack.c.h.b16 %v150
    %v708 = vunpack.c.l.b16 %v151
    %v709 = vunpack.c.h.b16 %v151
    %v710 = vunpack.c.l.b16 %v152
    %v711 = vunpack.c.h.b16 %v152
    %v712 = vunpack.c.l.b16 %v153
    %v713 = vunpack.c.h.b16 %v153
    %v714 = vunpack.c.l.b16 %v154
    %v715 = vunpack.c.h.b16 %v154
    %v716 = vunpack.c.l.b16 %v155
    %v717 = vunpack.c.h.b16 %v155
    %v718 = vunpack.c.l.b16 %v156
    %v719 = vunpack.c.h.b16 %v156
    %v720 = vunpack.c.l.b16 %v157
    %v721 = vunpack.c.h.b16 %v157
    %v722 = vunpack.c.l.b16 %v158
    %v723 = vunpack.c.h.b16 %v158
    %v724 = vunpack.c.l.b16 %v159
    %v725 = vunpack.c.h.b16 %v159
    %v726 = vunpack.c.l.b16 %v160
    %v727 = vunpack.c.h.b16 %v160
    %v728 = vunpack.c.l.b16 %v161
    %v729 = vunpack.c.h.b16 %v161
    %v730 = vunpack.c.l.b16 %v162
    %v731 = vunpack.c.h.b16 %v162
    %v732 = vunpack.c.l.b16 %v163
    %v733 = vunpack.c.h.b16 %v163
    %v734 = vunpack.c.l.b16 %v164
    %v735 = vunpack.c.h.b16 %v164
    %v736 = vunpack.c.l.b16 %v165
    %v737 = vunpack.c.h.b16 %v165
    %v738 = vunpack.c.l.b16 %v166
    %v739 = vunpack.c.h.b16 %v166
    %v740 = vunpack.c.l.b16 %v167
    %v741 = vunpack.c.h.b16 %v167
    %v742 = vunpack.c.l.b16 %v168
    %v743 = vunpack.c.h.b16 %v168
    %v744 = vunpack.c.l.b16 %v169
    %v745 = vunpack.c.h.b16 %v169
    %v746 = vunpack.c.l.b16 %v170
    %v747 = vunpack.c.h.b16 %v170
    %v748 = vunpack.c.l.b16 %v171
    %v749 = vunpack.c.h.b16 %v171
    %v750 = vunpack.c.l.b16 %v172
    %v751 = vunpack.c.h.b16 %v172
    %v752 = vunpack.c.l.b16 %v173
    %v753 = vunpack.c.h.b16 %v173
    %v754 = vunpack.c.l.b16 %v174
    %v755 = vunpack.c.h.b16 %v174
    %v756 = vunpack.c.l.b16 %v175
    %v757 = vunpack.c.h.b16 %v175
    %v758 = vunpack.c.l.b16 %v176
    %v759 = vunpack.c.h.b16 %v176
    %v760 = vunpack.c.l.b16 %v177
    %v761 = vunpack.c.h.b16 %v177
    %v762 = vunpack.c.l.b16 %v178
    %v763 = vunpack.c.h.b16 %v178
    %v764 = vunpack.c.l.b16 %v179
    %v765 = vunpack.c.h.b16 %v179
    %v766 = vunpack.c.l.b16 %v180
    %v767 = vunpack.c.h.b16 %v180
    %v768 = vunpack.c.l.b16 %v181
    %v769 = vunpack.c.h.b16 %v181
    %v770 = vunpack.c.l.b16 %v182
    %v771 = vunpack.c.h.b16 %v182
    %v772 = vunpack.c.l.b16 %v183
    %v773 = vunpack.c.h.b16 %v183
    %v774 = vunpack.c.l.b16 %v184
    %v775 = vunpack.c.h.b16 %v184
    %v776 = vunpack.c.l.b16 %v185
    %v777 = vunpack.c.h.b16 %v185
    %v778 = vunpack.c.l.b16 %v186
    %v779 = vunpack.c.h.b16 %v186
    %v780 = vunpack.c.l.b16 %v187
    %v781 = vunpack.c.h.b16 %v187
    %v782 = vunpack.c.l.b16 %v188
    %v783 = vunpack.c.h.b16 %v188
    %v784 = vunpack.c.l.b16 %v189
    %v785 = vunpack.c.h.b16 %v189
    %v786 = vunpack.c.l.b16 %v190
    %v787 = vunpack.c.h.b16 %v190
    %v788 = vunpack.c.l.b16 %v191
    %v789 = vunpack.c.h.b16 %v191
    %v790 = vunpack.c.l.b16 %v192
    %v791 = vunpack.c.h.b16 %v192
    %v792 = vunpack.c.l.b16 %v193
    %v793 = vunpack.c.h.b16 %v193
    %v794 = vunpack.c.l.b16 %v194
    %v795 = vunpack.c.h.b16 %v194
    %v796 = vunpack.c.l.b16 %v195
    %v797 = vunpack.c.h.b16 %v195
    %v798 = vunpack.c.l.b16 %v196
    %v799 = vunpack.c.h.b16 %v196
    %v800 = vunpack.c.l.b16 %v197
    %v801 = vunpack.c.h.b16 %v197
    %v802 = vunpack.c.l.b16 %v198
    %v803 = vunpack.c.h.b16 %v198
    %v804 = vunpack.c.l.b16 %v199
    %v805 = vunpack.c.h.b16 %v199
    %v806 = vunpack.c.l.b16 %v200
    %v807 = vunpack.c.h.b16 %v200
    %v808 = vunpack.c.l.b16 %v201
    %v809 = vunpack.c.h.b16 %v201
    %v810 = vunpack.c.l.b16 %v202
    %v811 = vunpack.c.h.b16 %v202
    %v812 = vunpack.c.l.b16 %v203
    %v813 = vunpack.c.h.b16 %v203
    %v814 = vunpack.c.l.b16 %v204
    %v815 = vunpack.c.h.b16 %v204
    %v816 = vunpack.c.l.b16 %v205
    %v817 = vunpack.c.h.b16 %v205
    %v818 = vunpack.c.l.b16 %v206
    %v819 = vunpack.c.h.b16 %v206
    %v820 = vunpack.c.l.b16 %v207
    %v821 = vunpack.c.h.b16 %v207
    %v822 = vunpack.c.l.b16 %v208
    %v823 = vunpack.c.h.b16 %v208
    %v824 = vunpack.c.l.b16 %v209
    %v825 = vunpack.c.h.b16 %v209
    %v826 = vunpack.c.l.b16 %v210
    %v827 = vunpack.c.h.b16 %v210
    %v828 = vunpack.c.l.b16 %v211
    %v829 = vunpack.c.h.b16 %v211
    %v830 = vunpack.c.l.b16 %v212
    %v831 = vunpack.c.h.b16 %v212
    %v832 = vunpack.c.l.b16 %v213
    %v833 = vunpack.c.h.b16 %v213
    %v834 = vunpack.c.l.b16 %v214
    %v835 = vunpack.c.h.b16 %v214
    %v836 = vunpack.c.l.b16 %v215
    %v837 = vunpack.c.h.b16 %v215
    %v838 = vunpack.c.l.b16 %v216
    %v839 = vunpack.c.h.b16 %v216
    %v840 = vunpack.c.l.b16 %v217
    %v841 = vunpack.c.h.b16 %v217
    %v842 = vunpack.c.l.b16 %v218
    %v843 = vunpack.c.h.b16 %v218
    %v844 = vunpack.c.l.b16 %v219
    %v845 = vunpack.c.h.b16 %v219
    %v846 = vunpack.c.l.b16 %v220
    %v847 = vunpack.c.h.b16 %v220
    %v848 = vunpack.c.l.b16 %v221
    %v849 = vunpack.c.h.b16 %v221
    %v850 = vunpack.c.l.b16 %v222
    %v851 = vunpack.c.h.b16 %v222
    %v852 = vunpack.c.l.b16 %v223
    %v853 = vunpack.c.h.b16 %v223
    %v854 = vunpack.c.l.b16 %v224
    %v855 = vunpack.c.h.b16 %v224
    %v856 = vunpack.c.l.b16 %v225
    %v857 = vunpack.c.h.b16 %v225
    %v858 = vunpack.c.l.b16 %v226
    %v859 = vunpack.c.h.b16 %v226
    %v860 = vunpack.c.l.b16 %v227
    %v861 = vunpack.c.h.b16 %v227
    %v862 = vunpack.c.l.b16 %v228
    %v863 = vunpack.c.h.b16 %v228
    %v864 = vunpack.c.l.b16 %v229
    %v865 = vunpack.c.h.b16 %v229
    %v866 = vunpack.c.l.b16 %v230
    %v867 = vunpack.c.h.b16 %v230
    %v868 = vunpack.c.l.b16 %v231
    %v869 = vunpack.c.h.b16 %v231
    %v870 = vunpack.c.l.b16 %v232
    %v871 = vunpack.c.h.b16 %v232
    %v872 = vunpack.c.l.b16 %v233
    %v873 = vunpack.c.h.b16 %v233
    %v874 = vunpack.c.l.b16 %v234
    %v875 = vunpack.c.h.b16 %v234
    %v876 = vunpack.c.l.b16 %v235
    %v877 = vunpack.c.h.b16 %v235
    %v878 = vunpack.c.l.b16 %v236
    %v879 = vunpack.c.h.b16 %v236
    %v880 = vunpack.c.l.b16 %v237
    %v881 = vunpack.c.h.b16 %v237
    %v882 = vunpack.c.l.b16 %v238
    %v883 = vunpack.c.h.b16 %v238
    %v884 = vunpack.c.l.b16 %v239
    %v885 = vunpack.c.h.b16 %v239
    %v886 = vunpack.c.l.b16 %v240
    %v887 = vunpack.c.h.b16 %v240
    %v888 = vunpack.c.l.b16 %v241
    %v889 = vunpack.c.h.b16 %v241
    %v890 = vunpack.c.l.b16 %v242
    %v891 = vunpack.c.h.b16 %v242
    %v892 = vunpack.c.l.b16 %v243
    %v893 = vunpack.c.h.b16 %v243
    %v894 = vunpack.c.l.b16 %v244
    %v895 = vunpack.c.h.b16 %v244
    %v896 = vunpack.c.l.b16 %v245
    %v897 = vunpack.c.h.b16 %v245
    %v898 = vunpack.c.l.b16 %v246
    %v899 = vunpack.c.h.b16 %v246
    %v900 = vunpack.c.l.b16 %v247
    %v901 = vunpack.c.h.b16 %v247
    %v902 = vunpack.c.l.b16 %v248
    %v903 = vunpack.c.h.b16 %v248
    %v904 = vunpack.c.l.b16 %v249
    %v905 = vunpack.c.h.b16 %v249
    %v906 = vunpack.c.l.b16 %v250
    %v907 = vunpack.c.h.b16 %v250
    %v908 = vunpack.c.l.b16 %v251
    %v909 = vunpack.c.h.b16 %v251
    %v910 = vunpack.c.l.b16 %v252
    %v911 = vunpack.c.h.b16 %v252
    %v912 = vunpack.c.l.b16 %v253
    %v913 = vunpack.c.h.b16 %v253
    %v914 = vunpack.c.l.b16 %v254
    %v915 = vunpack.c.h.b16 %v254
    %v916 = vunpack.c.l.b16 %v255
    %v917 = vunpack.c.h.b16 %v255
    %v918 = vunpack.c.l.b16 %v256
    %v919 = vunpack.c.h.b16 %v256
    %v920 = vunpack.c.l.b16 %v257
    %v921 = vunpack.c.h.b16 %v257
    %v922 = vunpack.c.l.b16 %v258
    %v923 = vunpack.c.h.b16 %v258
    %v924 = vunpack.c.l.b16 %v259
    %v925 = vunpack.c.h.b16 %v259
    %v926 = vunpack.c.l.b16 %v260
    %v927 = vunpack.c.h.b16 %v260
    %v928 = vunpack.c.l.b16 %v261
    %v929 = vunpack.c.h.b16 %v261
    %v930 = vunpack.c.l.b16 %v262
    %v931 = vunpack.c.h.b16 %v262
    %v932 = vunpack.c.l.b16 %v263
    %v933 = vunpack.c.h.b16 %v263
    %v934 = vunpack.c.l.b16 %v264
    %v935 = vunpack.c.h.b16 %v264
    %v936 = vunpack.c.l.b16 %v265
    %v937 = vunpack.c.h.b16 %v265
    %v938 = vunpack.c.l.b16 %v266
    %v939 = vunpack.c.h.b16 %v266
    %v940 = vunpack.c.l.b16 %v267
    %v941 = vunpack.c.h.b16 %v267
    %v942 = vunpack.c.l.b16 %v268
    %v943 = vunpack.c.h.b16 %v268
    %v944 = vunpack.c.l.b16 %v269
    %v945 = vunpack.c.h.b16 %v269
    %v946 = vunpack.c.l.b16 %v270
    %v947 = vunpack.c.h.b16 %v270
    %v948 = vunpack.c.l.b16 %v271
    %v949 = vunpack.c.h.b16 %v271
    %v950 = vunpack.c.l.b16 %v272
    %v951 = vunpack.c.h.b16 %v272
    %v952 = vunpack.c.l.b16 %v273
    %v953 = vunpack.c.h.b16 %v273
    %v954 = vunpack.c.l.b16 %v274
    %v955 = vunpack.c.h.b16 %v274
    %v956 = vunpack.c.l.b16 %v275
    %v957 = vunpack.c.h.b16 %v275
    %v958 = vunpack.c.l.b16 %v276
    %v959 = vunpack.c.h.b16 %v276
    %v960 = vunpack.c.l.b16 %v277
    %v961 = vunpack.c.h.b16 %v277
    %v962 = vunpack.c.l.b16 %v278
    %v963 = vunpack.c.h.b16 %v278
    %v964 = vunpack.c.l.b16 %v279
    %v965 = vunpack.c.h.b16 %v279
    %v966 = vunpack.c.l.b16 %v280
    %v967 = vunpack.c.h.b16 %v280
    %v968 = vunpack.c.l.b16 %v281
    %v969 = vunpack.c.h.b16 %v281
    %v970 = vunpack.c.l.b16 %v282
    %v971 = vunpack.c.h.b16 %v282
    %v972 = vunpack.c.l.b16 %v283
    %v973 = vunpack.c.h.b16 %v283
    %v974 = vunpack.c.l.b16 %v284
    %v975 = vunpack.c.h.b16 %v284
    %v976 = vunpack.c.l.b16 %v285
    %v977 = vunpack.c.h.b16 %v285
    %v978 = vunpack.c.l.b16 %v286
    %v979 = vunpack.c.h.b16 %v286
    %v980 = vunpack.c.l.b16 %v287
    %v981 = vunpack.c.h.b16 %v287
    %v982 = vunpack.c.l.b16 %v288
    %v983 = vunpack.c.h.b16 %v288
    %v984 = vunpack.c.l.b16 %v289
    %v985 = vunpack.c.h.b16 %v289
    %v986 = vunpack.c.l.b16 %v290
    %v987 = vunpack.c.h.b16 %v290
    %v988 = vunpack.c.l.b16 %v291
    %v989 = vunpack.c.h.b16 %v291
    %v990 = vunpack.c.l.b16 %v292
    %v991 = vunpack.c.h.b16 %v292
    %v992 = vunpack.c.l.b16 %v293
    %v993 = vunpack.c.h.b16 %v293
    %v994 = vunpack.c.l.b16 %v294
    %v995 = vunpack.c.h.b16 %v294
    %v996 = vunpack.c.l.b16 %v295
    %v997 = vunpack.c.h.b16 %v295
    %v998 = vunpack.c.l.b16 %v296
    %v999 = vunpack.c.h.b16 %v296
    %v1000 = vunpack.c.l.b16 %v297
    %v1001 = vunpack.c.h.b16 %v297
    %v1002 = vunpack.c.l.b16 %v298
    %v1003 = vunpack.c.h.b16 %v298
    %v1004 = vunpack.c.l.b16 %v299
    %v1005 = vunpack.c.h.b16 %v299
    %v1006 = vunpack.c.l.b16 %v300
    %v1007 = vunpack.c.h.b16 %v300
    %v1008 = vunpack.c.l.b16 %v301
    %v1009 = vunpack.c.h.b16 %v301
    %v1010 = vunpack.c.l.b16 %v302
    %v1011 = vunpack.c.h.b16 %v302
    %v1012 = vunpack.c.l.b16 %v303
    %v1013 = vunpack.c.h.b16 %v303
    %v1014 = vunpack.c.l.b16 %v304
    %v1015 = vunpack.c.h.b16 %v304
    %v1016 = vunpack.c.l.b16 %v305
    %v1017 = vunpack.c.h.b16 %v305
    %v1018 = vunpack.c.l.b16 %v306
    %v1019 = vunpack.c.h.b16 %v306
    %v1020 = vunpack.c.l.b16 %v307
    %v1021 = vunpack.c.h.b16 %v307
    %v1022 = vunpack.c.l.b16 %v308
    %v1023 = vunpack.c.h.b16 %v308
    %v1024 = vunpack.c.l.b16 %v309
    %v1025 = vunpack.c.h.b16 %v309
    %v1026 = vunpack.c.l.b16 %v310
    %v1027 = vunpack.c.h.b16 %v310
    %v1028 = vunpack.c.l.b16 %v311
    %v1029 = vunpack.c.h.b16 %v311
    %v1030 = vunpack.c.l.b16 %v312
    %v1031 = vunpack.c.h.b16 %v312
    %v1032 = vunpack.c.l.b16 %v313
    %v1033 = vunpack.c.h.b16 %v313
    %v1034 = vunpack.c.l.b16 %v314
    %v1035 = vunpack.c.h.b16 %v314
    %v1036 = vunpack.c.l.b16 %v315
    %v1037 = vunpack.c.h.b16 %v315
    %v1038 = vunpack.c.l.b16 %v316
    %v1039 = vunpack.c.h.b16 %v316
    %v1040 = vunpack.c.l.b16 %v317
    %v1041 = vunpack.c.h.b16 %v317
    %v1042 = vunpack.c.l.b16 %v318
    %v1043 = vunpack.c.h.b16 %v318
    %v1044 = vunpack.c.l.b16 %v319
    %v1045 = vunpack.c.h.b16 %v319
    %v1046 = vunpack.c.l.b16 %v320
    %v1047 = vunpack.c.h.b16 %v320
    %v1048 = vunpack.c.l.b16 %v321
    %v1049 = vunpack.c.h.b16 %v321
    %v1050 = vunpack.c.l.b16 %v322
    %v1051 = vunpack.c.h.b16 %v322
    %v1052 = vunpack.c.l.b16 %v323
    %v1053 = vunpack.c.h.b16 %v323
    %v1054 = vunpack.c.l.b16 %v324
    %v1055 = vunpack.c.h.b16 %v324
    %v1056 = vunpack.c.l.b16 %v325
    %v1057 = vunpack.c.h.b16 %v325
    %v1058 = vunpack.c.l.b16 %v326
    %v1059 = vunpack.c.h.b16 %v326
    %v1060 = vunpack.c.l.b16 %v327
    %v1061 = vunpack.c.h.b16 %v327
    %v1062 = vunpack.c.l.b16 %v328
    %v1063 = vunpack.c.h.b16 %v328
    %v1064 = vunpack.c.l.b16 %v329
    %v1065 = vunpack.c.h.b16 %v329
    %v1066 = vunpack.c.l.b16 %v330
    %v1067 = vunpack.c.h.b16 %v330
    %v1068 = vunpack.c.l.b16 %v331
    %v1069 = vunpack.c.h.b16 %v331
    %v1070 = vunpack.c.l.b16 %v332
    %v1071 = vunpack.c.h.b16 %v332
    %v1072 = vunpack.c.l.b16 %v333
    %v1073 = vunpack.c.h.b16 %v333
    %v1074 = vunpack.c.l.b16 %v334
    %v1075 = vunpack.c.h.b16 %v334
    %v1076 = vunpack.c.l.b16 %v335
    %v1077 = vunpack.c.h.b16 %v335
    %v1078 = vunpack.c.l.b16 %v336
    %v1079 = vunpack.c.h.b16 %v336
    %v1080 = vunpack.c.l.b16 %v337
    %v1081 = vunpack.c.h.b16 %v337
    %v1082 = vunpack.c.l.b16 %v338
    %v1083 = vunpack.c.h.b16 %v338
    %v1084 = vunpack.c.l.b16 %v339
    %v1085 = vunpack.c.h.b16 %v339
    %v1086 = vunpack.c.l.b16 %v340
    %v1087 = vunpack.c.h.b16 %v340
    %v1088 = vunpack.c.l.b16 %v341
    %v1089 = vunpack.c.h.b16 %v341
    %v1090 = vunpack.c.l.b16 %v342
    %v1091 = vunpack.c.h.b16 %v342
    %v1092 = vunpack.c.l.b16 %v343
    %v1093 = vunpack.c.h.b16 %v343
    %v1094 = vunpack.c.l.b16 %v344
    %v1095 = vunpack.c.h.b16 %v344
    %v1096 = vunpack.c.l.b16 %v345
    %v1097 = vunpack.c.h.b16 %v345
    %v1098 = vunpack.c.l.b16 %v346
    %v1099 = vunpack.c.h.b16 %v346
    %v1100 = vunpack.c.l.b16 %v347
    %v1101 = vunpack.c.h.b16 %v347
    %v1102 = vunpack.c.l.b16 %v348
    %v1103 = vunpack.c.h.b16 %v348
    %v1104 = vunpack.c.l.b16 %v349
    %v1105 = vunpack.c.h.b16 %v349
    %v1106 = vunpack.c.l.b16 %v350
    %v1107 = vunpack.c.h.b16 %v350
    %v1108 = vunpack.c.l.b16 %v351
    %v1109 = vunpack.c.h.b16 %v351
    %v1110 = vunpack.c.l.b16 %v352
    %v1111 = vunpack.c.h.b16 %v352
    %v1112 = vunpack.c.l.b16 %v353
    %v1113 = vunpack.c.h.b16 %v353
    %v1114 = vunpack.c.l.b16 %v354
    %v1115 = vunpack.c.h.b16 %v354
    %v1116 = vunpack.c.l.b16 %v355
    %v1117 = vunpack.c.h.b16 %v355
    %v1118 = vunpack.c.l.b16 %v356
    %v1119 = vunpack.c.h.b16 %v356
    %v1120 = vunpack.c.l.b16 %v357
    %v1121 = vunpack.c.h.b16 %v357
    %v1122 = vunpack.c.l.b16 %v358
    %v1123 = vunpack.c.h.b16 %v358
    %v1124 = vunpack.c.l.b16 %v359
    %v1125 = vunpack.c.h.b16 %v359
    %v1126 = vunpack.c.l.b16 %v360
    %v1127 = vunpack.c.h.b16 %v360
    %v1128 = vunpack.c.l.b16 %v361
    %v1129 = vunpack.c.h.b16 %v361
    %v1130 = vunpack.c.l.b16 %v362
    %v1131 = vunpack.c.h.b16 %v362
    %v1132 = vunpack.c.l.b16 %v363
    %v1133 = vunpack.c.h.b16 %v363
    %v1134 = vunpack.c.l.b16 %v364
    %v1135 = vunpack.c.h.b16 %v364
    %v1136 = vunpack.c.l.b16 %v365
    %v1137 = vunpack.c.h.b16 %v365
    %v1138 = vunpack.c.l.b16 %v366
    %v1139 = vunpack.c.h.b16 %v366
    %v1140 = vunpack.c.l.b16 %v367
    %v1141 = vunpack.c.h.b16 %v367
    %v1142 = vpack.c.b16 %v632, %v630
    %v1143 = vpack.c.b16 %v633, %v631
    %v1144 = vpack.c.b16 %v636, %v634
    %v1145 = vpack.c.b16 %v637, %v635
    %v1146 = vpack.c.b16 %v640, %v638
    %v1147 = vpack.c.b16 %v641, %v639
    %v1148 = vpack.c.b16 %v644, %v642
    %v1149 = vpack.c.b16 %v645, %v643
    %v1150 = vpack.c.b16 %v648, %v646
    %v1151 = vpack.c.b16 %v649, %v647
    %v1152 = vpack.c.b16 %v652, %v650
    %v1153 = vpack.c.b16 %v653, %v651
    %v1154 = vpack.c.b16 %v656, %v654
    %v1155 = vpack.c.b16 %v657, %v655
    %v1156 = vpack.c.b16 %v660, %v658
    %v1157 = vpack.c.b16 %v661, %v659
    %v1158 = vpack.c.b16 %v664, %v662
    %v1159 = vpack.c.b16 %v665, %v663
    %v1160 = vpack.c.b16 %v668, %v666
    %v1161 = vpack.c.b16 %v669, %v667
    %v1162 = vpack.c.b16 %v672, %v670
    %v1163 = vpack.c.b16 %v673, %v671
    %v1164 = vpack.c.b16 %v676, %v674
    %v1165 = vpack.c.b16 %v677, %v675
    %v1166 = vpack.c.b16 %v680, %v678
    %v1167 = vpack.c.b16 %v681, %v679
    %v1168 = vpack.c.b16 %v684, %v682
    %v1169 = vpack.c.b16 %v685, %v683
    %v1170 = vpack.c.b16 %v688, %v686
    %v1171 = vpack.c.b16 %v689, %v687
    %v1172 = vpack.c.b16 %v692, %v690
    %v1173 = vpack.c.b16 %v693, %v691
    %v1174 = vpack.c.b16 %v696, %v694
    %v1175 = vpack.c.b16 %v697, %v695
    %v1176 = vpack.c.b16 %v700, %v698
    %v1177 = vpack.c.b16 %v701, %v699
    %v1178 = vpack.c.b16 %v704, %v702
    %v1179 = vpack.c.b16 %v705, %v703
    %v1180 = vpack.c.b16 %v708, %v706
    %v1181 = vpack.c.b16 %v709, %v707
    %v1182 = vpack.c.b16 %v712, %v710
    %v1183 = vpack.c.b16 %v713, %v711
    %v1184 = vpack.c.b16 %v716, %v714
    %v1185 = vpack.c.b16 %v717, %v715
    %v1186 = vpack.c.b16 %v720, %v718
    %v1187 = vpack.c.b16 %v721, %v719
    %v1188 = vpack.c.b16 %v724, %v722
    %v1189 = vpack.c.b16 %v725, %v723
    %v1190 = vpack.c.b16 %v728, %v726
    %v1191 = vpack.c.b16 %v729, %v727
    %v1192 = vpack.c.b16 %v732, %v730
    %v1193 = vpack.c.b16 %v733, %v731
    %v1194 = vpack.c.b16 %v736, %v734
    %v1195 = vpack.c.b16 %v737, %v735
    %v1196 = vpack.c.b16 %v740, %v738
    %v1197 = vpack.c.b16 %v741, %v739
    %v1198 = vpack.c.b16 %v744, %v742
    %v1199 = vpack.c.b16 %v745, %v743
    %v1200 = vpack.c.b16 %v748, %v746
    %v1201 = vpack.c.b16 %v749, %v747
    %v1202 = vpack.c.b16 %v752, %v750
    %v1203 = vpack.c.b16 %v753, %v751
    %v1204 = vpack.c.b16 %v756, %v754
    %v1205 = vpack.c.b16 %v757, %v755
    %v1206 = vpack.c.b16 %v760, %v758
    %v1207 = vpack.c.b16 %v761, %v759
    %v1208 = vpack.c.b16 %v764, %v762
    %v1209 = vpack.c.b16 %v765, %v763
    %v1210 = vpack.c.b16 %v768, %v766
    %v1211 = vpack.c.b16 %v769, %v767
    %v1212 = vpack.c.b16 %v772, %v770
    %v1213 = vpack.c.b16 %v773, %v771
    %v1214 = vpack.c.b16 %v776, %v774
    %v1215 = vpack.c.b16 %v777, %v775
    %v1216 = vpack.c.b16 %v780, %v778
    %v1217 = vpack.c.b16 %v781, %v779
    %v1218 = vpack.c.b16 %v784, %v782
    %v1219 = vpack.c.b16 %v785, %v783
    %v1220 = vpack.c.b16 %v788, %v786
    %v1221 = vpack.c.b16 %v789, %v787
    %v1222 = vpack.c.b16 %v792, %v790
    %v1223 = vpack.c.b16 %v793, %v791
    %v1224 = vpack.c.b16 %v796, %v794
    %v1225 = vpack.c.b16 %v797, %v795
    %v1226 = vpack.c.b16 %v800, %v798
    %v1227 = vpack.c.b16 %v801, %v799
    %v1228 = vpack.c.b16 %v804, %v802
    %v1229 = vpack.c.b16 %v805, %v803
    %v1230 = vpack.c.b16 %v808, %v806
    %v1231 = vpack.c.b16 %v809, %v807
    %v1232 = vpack.c.b16 %v812, %v810
    %v1233 = vpack.c.b16 %v813, %v811
    %v1234 = vpack.c.b16 %v816, %v814
    %v1235 = vpack.c.b16 %v817, %v815
    %v1236 = vpack.c.b16 %v820, %v818
    %v1237 = vpack.c.b16 %v821, %v819
    %v1238 = vpack.c.b16 %v824, %v822
    %v1239 = vpack.c.b16 %v825, %v823
    %v1240 = vpack.c.b16 %v828, %v826
    %v1241 = vpack.c.b16 %v829, %v827
    %v1242 = vpack.c.b16 %v832, %v830
    %v1243 = vpack.c.b16 %v833, %v831
    %v1244 = vpack.c.b16 %v836, %v834
    %v1245 = vpack.c.b16 %v837, %v835
    %v1246 = vpack.c.b16 %v840, %v838
    %v1247 = vpack.c.b16 %v841, %v839
    %v1248 = vpack.c.b16 %v844, %v842
    %v1249 = vpack.c.b16 %v845, %v843
    %v1250 = vpack.c.b16 %v848, %v846
    %v1251 = vpack.c.b16 %v849, %v847
    %v1252 = vpack.c.b16 %v852, %v850
    %v1253 = vpack.c.b16 %v853, %v851
    %v1254 = vpack.c.b16 %v856, %v854
    %v1255 = vpack.c.b16 %v857, %v855
    %v1256 = vpack.c.b16 %v860, %v858
    %v1257 = vpack.c.b16 %v861, %v859
    %v1258 = vpack.c.b16 %v864, %v862
    %v1259 = vpack.c.b16 %v865, %v863
    %v1260 = vpack.c.b16 %v868, %v866
    %v1261 = vpack.c.b16 %v869, %v867
    %v1262 = vpack.c.b16 %v872, %v870
    %v1263 = vpack.c.b16 %v873, %v871
    %v1264 = vpack.c.b16 %v876, %v874
    %v1265 = vpack.c.b16 %v877, %v875
    %v1266 = vpack.c.b16 %v880, %v878
    %v1267 = vpack.c.b16 %v881, %v879
    %v1268 = vpack.c.b16 %v884, %v882
    %v1269 = vpack.c.b16 %v885, %v883
    %v1270 = vpack.c.b16 %v888, %v886
    %v1271 = vpack.c.b16 %v889, %v887
    %v1272 = vpack.c.b16 %v892, %v890
    %v1273 = vpack.c.b16 %v893, %v891
    %v1274 = vpack.c.b16 %v896, %v894
    %v1275 = vpack.c.b16 %v897, %v895
    %v1276 = vpack.c.b16 %v900, %v898
    %v1277 = vpack.c.b16 %v901, %v899
    %v1278 = vpack.c.b16 %v904, %v902
    %v1279 = vpack.c.b16 %v905, %v903
    %v1280 = vpack.c.b16 %v908, %v906
    %v1281 = vpack.c.b16 %v909, %v907
    %v1282 = vpack.c.b16 %v912, %v910
    %v1283 = vpack.c.b16 %v913, %v911
    %v1284 = vpack.c.b16 %v916, %v914
    %v1285 = vpack.c.b16 %v917, %v915
    %v1286 = vpack.c.b16 %v920, %v918
    %v1287 = vpack.c.b16 %v921, %v919
    %v1288 = vpack.c.b16 %v924, %v922
    %v1289 = vpack.c.b16 %v925, %v923
    %v1290 = vpack.c.b16 %v928, %v926
    %v1291 = vpack.c.b16 %v929, %v927
    %v1292 = vpack.c.b16 %v932, %v930
    %v1293 = vpack.c.b16 %v933, %v931
    %v1294 = vpack.c.b16 %v936, %v934
    %v1295 = vpack.c.b16 %v937, %v935
    %v1296 = vpack.c.b16 %v940, %v938
    %v1297 = vpack.c.b16 %v941, %v939
    %v1298 = vpack.c.b16 %v944, %v942
    %v1299 = vpack.c.b16 %v945, %v943
    %v1300 = vpack.c.b16 %v948, %v946
    %v1301 = vpack.c.b16 %v949, %v947
    %v1302 = vpack.c.b16 %v952, %v950
    %v1303 = vpack.c.b16 %v953, %v951
    %v1304 = vpack.c.b16 %v956, %v954
    %v1305 = vpack.c.b16 %v957, %v955
    %v1306 = vpack.c.b16 %v960, %v958
    %v1307 = vpack.c.b16 %v961, %v959
    %v1308 = vpack.c.b16 %v964, %v962
    %v1309 = vpack.c.b16 %v965, %v963
    %v1310 = vpack.c.b16 %v968, %v966
    %v1311 = vpack.c.b16 %v969, %v967
    %v1312 = vpack.c.b16 %v972, %v970
    %v1313 = vpack.c.b16 %v973, %v971
    %v1314 = vpack.c.b16 %v976, %v974
    %v1315 = vpack.c.b16 %v977, %v975
    %v1316 = vpack.c.b16 %v980, %v978
    %v1317 = vpack.c.b16 %v981, %v979
    %v1318 = vpack.c.b16 %v984, %v982
    %v1319 = vpack.c.b16 %v985, %v983
    %v1320 = vpack.c.b16 %v988, %v986
    %v1321 = vpack.c.b16 %v989, %v987
    %v1322 = vpack.c.b16 %v992, %v990
    %v1323 = vpack.c.b16 %v993, %v991
    %v1324 = vpack.c.b16 %v996, %v994
    %v1325 = vpack.c.b16 %v997, %v995
    %v1326 = vpack.c.b16 %v1000, %v998
    %v1327 = vpack.c.b16 %v1001, %v999
    %v1328 = vpack.c.b16 %v1004, %v1002
    %v1329 = vpack.c.b16 %v1005, %v1003
    %v1330 = vpack.c.b16 %v1008, %v1006
    %v1331 = vpack.c.b16 %v1009, %v1007
    %v1332 = vpack.c.b16 %v1012, %v1010
    %v1333 = vpack.c.b16 %v1013, %v1011
    %v1334 = vpack.c.b16 %v1016, %v1014
    %v1335 = vpack.c.b16 %v1017, %v1015
    %v1336 = vpack.c.b16 %v1020, %v1018
    %v1337 = vpack.c.b16 %v1021, %v1019
    %v1338 = vpack.c.b16 %v1024, %v1022
    %v1339 = vpack.c.b16 %v1025, %v1023
    %v1340 = vpack.c.b16 %v1028, %v1026
    %v1341 = vpack.c.b16 %v1029, %v1027
    %v1342 = vpack.c.b16 %v1032, %v1030
    %v1343 = vpack.c.b16 %v1033, %v1031
    %v1344 = vpack.c.b16 %v1036, %v1034
    %v1345 = vpack.c.b16 %v1037, %v1035
    %v1346 = vpack.c.b16 %v1040, %v1038
    %v1347 = vpack.c.b16 %v1041, %v1039
    %v1348 = vpack.c.b16 %v1044, %v1042
    %v1349 = vpack.c.b16 %v1045, %v1043
    %v1350 = vpack.c.b16 %v1048, %v1046
    %v1351 = vpack.c.b16 %v1049, %v1047
    %v1352 = vpack.c.b16 %v1052, %v1050
    %v1353 = vpack.c.b16 %v1053, %v1051
    %v1354 = vpack.c.b16 %v1056, %v1054
    %v1355 = vpack.c.b16 %v1057, %v1055
    %v1356 = vpack.c.b16 %v1060, %v1058
    %v1357 = vpack.c.b16 %v1061, %v1059
    %v1358 = vpack.c.b16 %v1064, %v1062
    %v1359 = vpack.c.b16 %v1065, %v1063
    %v1360 = vpack.c.b16 %v1068, %v1066
    %v1361 = vpack.c.b16 %v1069, %v1067
    %v1362 = vpack.c.b16 %v1072, %v1070
    %v1363 = vpack.c.b16 %v1073, %v1071
    %v1364 = vpack.c.b16 %v1076, %v1074
    %v1365 = vpack.c.b16 %v1077, %v1075
    %v1366 = vpack.c.b16 %v1080, %v1078
    %v1367 = vpack.c.b16 %v1081, %v1079
    %v1368 = vpack.c.b16 %v1084, %v1082
    %v1369 = vpack.c.b16 %v1085, %v1083
    %v1370 = vpack.c.b16 %v1088, %v1086
    %v1371 = vpack.c.b16 %v1089, %v1087
    %v1372 = vpack.c.b16 %v1092, %v1090
    %v1373 = vpack.c.b16 %v1093, %v1091
    %v1374 = vpack.c.b16 %v1096, %v1094
    %v1375 = vpack.c.b16 %v1097, %v1095
    %v1376 = vpack.c.b16 %v1100, %v1098
    %v1377 = vpack.c.b16 %v1101, %v1099
    %v1378 = vpack.c.b16 %v1104, %v1102
    %v1379 = vpack.c.b16 %v1105, %v1103
    %v1380 = vpack.c.b16 %v1108, %v1106
    %v1381 = vpack.c.b16 %v1109, %v1107
    %v1382 = vpack.c.b16 %v1112, %v1110
    %v1383 = vpack.c.b16 %v1113, %v1111
    %v1384 = vpack.c.b16 %v1116, %v1114
    %v1385 = vpack.c.b16 %v1117, %v1115
    %v1386 = vpack.c.b16 %v1120, %v1118
    %v1387 = vpack.c.b16 %v1121, %v1119
    %v1388 = vpack.c.b16 %v1124, %v1122
    %v1389 = vpack.c.b16 %v1125, %v1123
    %v1390 = vpack.c.b16 %v1128, %v1126
    %v1391 = vpack.c.b16 %v1129, %v1127
    %v1392 = vpack.c.b16 %v1132, %v1130
    %v1393 = vpack.c.b16 %v1133, %v1131
    %v1394 = vpack.c.b16 %v1136, %v1134
    %v1395 = vpack.c.b16 %v1137, %v1135
    %v1396 = vpack.c.b16 %v1140, %v1138
    %v1397 = vpack.c.b16 %v1141, %v1139
    %1654 = vmatpush.bf16.msra.mxu0 %v1156
    %1655 = vmatpush.bf16.msra.mxu0 %v1154
    %1656 = vmatpush.bf16.msra.mxu0 %v1152
    %1657 = vmatpush.bf16.msra.mxu0 %v1150
    %1658 = vmatpush.bf16.msra.mxu0 %v1148
    %1659 = vmatpush.bf16.msra.mxu0 %v1146
    %1660 = vmatpush.bf16.msra.mxu0 %v1144
    %1661 = vmatpush.bf16.msra.mxu0 %v1142
    %1662 = vmatmul.bf16.gmra.mxu0 %v96
    %v1663 = vpop.f32.mrf.mxu0
    %v1664 = vadd.f32 %v370, %v1663
    %v1665 = vpop.f32.mrf.mxu0
    %1666 = vdwg.mxu0
    %1667 = vmatpush.bf16.msra.mxu0 %v1172
    %1668 = vmatpush.bf16.msra.mxu0 %v1170
    %1669 = vmatpush.bf16.msra.mxu0 %v1168
    %1670 = vmatpush.bf16.msra.mxu0 %v1166
    %1671 = vmatpush.bf16.msra.mxu0 %v1164
    %1672 = vmatpush.bf16.msra.mxu0 %v1162
    %1673 = vmatpush.bf16.msra.mxu0 %v1160
    %1674 = vmatpush.bf16.msra.mxu0 %v1158
    %1675 = vmatmul.bf16.gmra.mxu0 %v97
    %v1676 = vpop.f32.mrf.mxu0
    %v1677 = vadd.f32 %v1664, %v1676
    %v1678 = vpop.f32.mrf.mxu0
    %1679 = vdwg.mxu0
    %1680 = vmatpush.bf16.msra.mxu0 %v1188
    %1681 = vmatpush.bf16.msra.mxu0 %v1186
    %1682 = vmatpush.bf16.msra.mxu0 %v1184
    %1683 = vmatpush.bf16.msra.mxu0 %v1182
    %1684 = vmatpush.bf16.msra.mxu0 %v1180
    %1685 = vmatpush.bf16.msra.mxu0 %v1178
    %1686 = vmatpush.bf16.msra.mxu0 %v1176
    %1687 = vmatpush.bf16.msra.mxu0 %v1174
    %1688 = vmatmul.bf16.gmra.mxu0 %v98
    %v1689 = vpop.f32.mrf.mxu0
    %v1690 = vadd.f32 %v1677, %v1689
    %v1691 = vpop.f32.mrf.mxu0
    %1692 = vdwg.mxu0
    %1693 = vmatpush.bf16.msra.mxu0 %v1204
    %1694 = vmatpush.bf16.msra.mxu0 %v1202
    %1695 = vmatpush.bf16.msra.mxu0 %v1200
    %1696 = vmatpush.bf16.msra.mxu0 %v1198
    %1697 = vmatpush.bf16.msra.mxu0 %v1196
    %1698 = vmatpush.bf16.msra.mxu0 %v1194
    %1699 = vmatpush.bf16.msra.mxu0 %v1192
    %1700 = vmatpush.bf16.msra.mxu0 %v1190
    %1701 = vmatmul.bf16.gmra.mxu0 %v99
    %v1702 = vpop.f32.mrf.mxu0
    %v1703 = vadd.f32 %v1690, %v1702
    %v1704 = vpop.f32.mrf.mxu0
    %1705 = vdwg.mxu0
    %1706 = vmatpush.bf16.msra.mxu0 %v1220
    %1707 = vmatpush.bf16.msra.mxu0 %v1218
    %1708 = vmatpush.bf16.msra.mxu0 %v1216
    %1709 = vmatpush.bf16.msra.mxu0 %v1214
    %1710 = vmatpush.bf16.msra.mxu0 %v1212
    %1711 = vmatpush.bf16.msra.mxu0 %v1210
    %1712 = vmatpush.bf16.msra.mxu0 %v1208
    %1713 = vmatpush.bf16.msra.mxu0 %v1206
    %1714 = vmatmul.bf16.gmra.mxu0 %v100
    %v1715 = vpop.f32.mrf.mxu0
    %v1716 = vadd.f32 %v1703, %v1715
    %v1717 = vpop.f32.mrf.mxu0
    %1718 = vdwg.mxu0
    %1719 = vmatpush.bf16.msra.mxu0 %v1236
    %1720 = vmatpush.bf16.msra.mxu0 %v1234
    %1721 = vmatpush.bf16.msra.mxu0 %v1232
    %1722 = vmatpush.bf16.msra.mxu0 %v1230
    %1723 = vmatpush.bf16.msra.mxu0 %v1228
    %1724 = vmatpush.bf16.msra.mxu0 %v1226
    %1725 = vmatpush.bf16.msra.mxu0 %v1224
    %1726 = vmatpush.bf16.msra.mxu0 %v1222
    %1727 = vmatmul.bf16.gmra.mxu0 %v101
    %v1728 = vpop.f32.mrf.mxu0
    %v1729 = vadd.f32 %v1716, %v1728
    %v1730 = vpop.f32.mrf.mxu0
    %1731 = vdwg.mxu0
    %1732 = vmatpush.bf16.msra.mxu0 %v1252
    %1733 = vmatpush.bf16.msra.mxu0 %v1250
    %1734 = vmatpush.bf16.msra.mxu0 %v1248
    %1735 = vmatpush.bf16.msra.mxu0 %v1246
    %1736 = vmatpush.bf16.msra.mxu0 %v1244
    %1737 = vmatpush.bf16.msra.mxu0 %v1242
    %1738 = vmatpush.bf16.msra.mxu0 %v1240
    %1739 = vmatpush.bf16.msra.mxu0 %v1238
    %1740 = vmatmul.bf16.gmra.mxu0 %v102
    %v1741 = vpop.f32.mrf.mxu0
    %v1742 = vadd.f32 %v1729, %v1741
    %v1743 = vpop.f32.mrf.mxu0
    %1744 = vdwg.mxu0
    %1745 = vmatpush.bf16.msra.mxu0 %v1268
    %1746 = vmatpush.bf16.msra.mxu0 %v1266
    %1747 = vmatpush.bf16.msra.mxu0 %v1264
    %1748 = vmatpush.bf16.msra.mxu0 %v1262
    %1749 = vmatpush.bf16.msra.mxu0 %v1260
    %1750 = vmatpush.bf16.msra.mxu0 %v1258
    %1751 = vmatpush.bf16.msra.mxu0 %v1256
    %1752 = vmatpush.bf16.msra.mxu0 %v1254
    %1753 = vmatmul.bf16.gmra.mxu0 %v103
    %v1754 = vpop.f32.mrf.mxu0
    %v1755 = vadd.f32 %v1742, %v1754
    %v1756 = vpop.f32.mrf.mxu0
    %1757 = vdwg.mxu0
    %1758 = vmatpush.bf16.msra.mxu0 %v1284
    %1759 = vmatpush.bf16.msra.mxu0 %v1282
    %1760 = vmatpush.bf16.msra.mxu0 %v1280
    %1761 = vmatpush.bf16.msra.mxu0 %v1278
    %1762 = vmatpush.bf16.msra.mxu0 %v1276
    %1763 = vmatpush.bf16.msra.mxu0 %v1274
    %1764 = vmatpush.bf16.msra.mxu0 %v1272
    %1765 = vmatpush.bf16.msra.mxu0 %v1270
    %1766 = vmatmul.bf16.gmra.mxu0 %v104
    %v1767 = vpop.f32.mrf.mxu0
    %v1768 = vadd.f32 %v1755, %v1767
    %v1769 = vpop.f32.mrf.mxu0
    %1770 = vdwg.mxu0
    %1771 = vmatpush.bf16.msra.mxu0 %v1300
    %1772 = vmatpush.bf16.msra.mxu0 %v1298
    %1773 = vmatpush.bf16.msra.mxu0 %v1296
    %1774 = vmatpush.bf16.msra.mxu0 %v1294
    %1775 = vmatpush.bf16.msra.mxu0 %v1292
    %1776 = vmatpush.bf16.msra.mxu0 %v1290
    %1777 = vmatpush.bf16.msra.mxu0 %v1288
    %1778 = vmatpush.bf16.msra.mxu0 %v1286
    %1779 = vmatmul.bf16.gmra.mxu0 %v105
    %v1780 = vpop.f32.mrf.mxu0
    %v1781 = vadd.f32 %v1768, %v1780
    %v1782 = vpop.f32.mrf.mxu0
    %1783 = vdwg.mxu0
    %1784 = vmatpush.bf16.msra.mxu0 %v1316
    %1785 = vmatpush.bf16.msra.mxu0 %v1314
    %1786 = vmatpush.bf16.msra.mxu0 %v1312
    %1787 = vmatpush.bf16.msra.mxu0 %v1310
    %1788 = vmatpush.bf16.msra.mxu0 %v1308
    %1789 = vmatpush.bf16.msra.mxu0 %v1306
    %1790 = vmatpush.bf16.msra.mxu0 %v1304
    %1791 = vmatpush.bf16.msra.mxu0 %v1302
    %1792 = vmatmul.bf16.gmra.mxu0 %v106
    %v1793 = vpop.f32.mrf.mxu0
    %v1794 = vadd.f32 %v1781, %v1793
    %v1795 = vpop.f32.mrf.mxu0
    %1796 = vdwg.mxu0
    %1797 = vmatpush.bf16.msra.mxu0 %v1332
    %1798 = vmatpush.bf16.msra.mxu0 %v1330
    %1799 = vmatpush.bf16.msra.mxu0 %v1328
    %1800 = vmatpush.bf16.msra.mxu0 %v1326
    %1801 = vmatpush.bf16.msra.mxu0 %v1324
    %1802 = vmatpush.bf16.msra.mxu0 %v1322
    %1803 = vmatpush.bf16.msra.mxu0 %v1320
    %1804 = vmatpush.bf16.msra.mxu0 %v1318
    %1805 = vmatmul.bf16.gmra.mxu0 %v107
    %v1806 = vpop.f32.mrf.mxu0
    %v1807 = vadd.f32 %v1794, %v1806
    %v1808 = vpop.f32.mrf.mxu0
    %1809 = vdwg.mxu0
    %1810 = vmatpush.bf16.msra.mxu0 %v1348
    %1811 = vmatpush.bf16.msra.mxu0 %v1346
    %1812 = vmatpush.bf16.msra.mxu0 %v1344
    %1813 = vmatpush.bf16.msra.mxu0 %v1342
    %1814 = vmatpush.bf16.msra.mxu0 %v1340
    %1815 = vmatpush.bf16.msra.mxu0 %v1338
    %1816 = vmatpush.bf16.msra.mxu0 %v1336
    %1817 = vmatpush.bf16.msra.mxu0 %v1334
    %1818 = vmatmul.bf16.gmra.mxu0 %v108
    %v1819 = vpop.f32.mrf.mxu0
    %v1820 = vadd.f32 %v1807, %v1819
    %v1821 = vpop.f32.mrf.mxu0
    %1822 = vdwg.mxu0
    %1823 = vmatpush.bf16.msra.mxu0 %v1364
    %1824 = vmatpush.bf16.msra.mxu0 %v1362
    %1825 = vmatpush.bf16.msra.mxu0 %v1360
    %1826 = vmatpush.bf16.msra.mxu0 %v1358
    %1827 = vmatpush.bf16.msra.mxu0 %v1356
    %1828 = vmatpush.bf16.msra.mxu0 %v1354
    %1829 = vmatpush.bf16.msra.mxu0 %v1352
    %1830 = vmatpush.bf16.msra.mxu0 %v1350
    %1831 = vmatmul.bf16.gmra.mxu0 %v109
    %v1832 = vpop.f32.mrf.mxu0
    %v1833 = vadd.f32 %v1820, %v1832
    %v1834 = vpop.f32.mrf.mxu0
    %1835 = vdwg.mxu0
    %1836 = vmatpush.bf16.msra.mxu0 %v1380
    %1837 = vmatpush.bf16.msra.mxu0 %v1378
    %1838 = vmatpush.bf16.msra.mxu0 %v1376
    %1839 = vmatpush.bf16.msra.mxu0 %v1374
    %1840 = vmatpush.bf16.msra.mxu0 %v1372
    %1841 = vmatpush.bf16.msra.mxu0 %v1370
    %1842 = vmatpush.bf16.msra.mxu0 %v1368
    %1843 = vmatpush.bf16.msra.mxu0 %v1366
    %1844 = vmatmul.bf16.gmra.mxu0 %v110
    %v1845 = vpop.f32.mrf.mxu0
    %v1846 = vadd.f32 %v1833, %v1845
    %v1847 = vpop.f32.mrf.mxu0
    %1848 = vdwg.mxu0
    %1849 = vmatpush.bf16.msra.mxu0 %v1396
    %1850 = vmatpush.bf16.msra.mxu0 %v1394
    %1851 = vmatpush.bf16.msra.mxu0 %v1392
    %1852 = vmatpush.bf16.msra.mxu0 %v1390
    %1853 = vmatpush.bf16.msra.mxu0 %v1388
    %1854 = vmatpush.bf16.msra.mxu0 %v1386
    %1855 = vmatpush.bf16.msra.mxu0 %v1384
    %1856 = vmatpush.bf16.msra.mxu0 %v1382
    %1857 = vmatmul.bf16.gmra.mxu0 %v111
    %v1858 = vpop.f32.mrf.mxu0
    %v1859 = vadd.f32 %v1846, %v1858
    %v1860 = vpop.f32.mrf.mxu0
    %1861 = vdwg.mxu0
    %1862 = vmatpush.bf16.msra.mxu0 %v1157
    %1863 = vmatpush.bf16.msra.mxu0 %v1155
    %1864 = vmatpush.bf16.msra.mxu0 %v1153
    %1865 = vmatpush.bf16.msra.mxu0 %v1151
    %1866 = vmatpush.bf16.msra.mxu0 %v1149
    %1867 = vmatpush.bf16.msra.mxu0 %v1147
    %1868 = vmatpush.bf16.msra.mxu0 %v1145
    %1869 = vmatpush.bf16.msra.mxu0 %v1143
    %1870 = vmatmul.bf16.gmra.mxu0 %v96
    %v1871 = vpop.f32.mrf.mxu0
    %v1872 = vadd.f32 %v371, %v1871
    %v1873 = vpop.f32.mrf.mxu0
    %1874 = vdwg.mxu0
    %1875 = vmatpush.bf16.msra.mxu0 %v1173
    %1876 = vmatpush.bf16.msra.mxu0 %v1171
    %1877 = vmatpush.bf16.msra.mxu0 %v1169
    %1878 = vmatpush.bf16.msra.mxu0 %v1167
    %1879 = vmatpush.bf16.msra.mxu0 %v1165
    %1880 = vmatpush.bf16.msra.mxu0 %v1163
    %1881 = vmatpush.bf16.msra.mxu0 %v1161
    %1882 = vmatpush.bf16.msra.mxu0 %v1159
    %1883 = vmatmul.bf16.gmra.mxu0 %v97
    %v1884 = vpop.f32.mrf.mxu0
    %v1885 = vadd.f32 %v1872, %v1884
    %v1886 = vpop.f32.mrf.mxu0
    %1887 = vdwg.mxu0
    %1888 = vmatpush.bf16.msra.mxu0 %v1189
    %1889 = vmatpush.bf16.msra.mxu0 %v1187
    %1890 = vmatpush.bf16.msra.mxu0 %v1185
    %1891 = vmatpush.bf16.msra.mxu0 %v1183
    %1892 = vmatpush.bf16.msra.mxu0 %v1181
    %1893 = vmatpush.bf16.msra.mxu0 %v1179
    %1894 = vmatpush.bf16.msra.mxu0 %v1177
    %1895 = vmatpush.bf16.msra.mxu0 %v1175
    %1896 = vmatmul.bf16.gmra.mxu0 %v98
    %v1897 = vpop.f32.mrf.mxu0
    %v1898 = vadd.f32 %v1885, %v1897
    %v1899 = vpop.f32.mrf.mxu0
    %1900 = vdwg.mxu0
    %1901 = vmatpush.bf16.msra.mxu0 %v1205
    %1902 = vmatpush.bf16.msra.mxu0 %v1203
    %1903 = vmatpush.bf16.msra.mxu0 %v1201
    %1904 = vmatpush.bf16.msra.mxu0 %v1199
    %1905 = vmatpush.bf16.msra.mxu0 %v1197
    %1906 = vmatpush.bf16.msra.mxu0 %v1195
    %1907 = vmatpush.bf16.msra.mxu0 %v1193
    %1908 = vmatpush.bf16.msra.mxu0 %v1191
    %1909 = vmatmul.bf16.gmra.mxu0 %v99
    %v1910 = vpop.f32.mrf.mxu0
    %v1911 = vadd.f32 %v1898, %v1910
    %v1912 = vpop.f32.mrf.mxu0
    %1913 = vdwg.mxu0
    %1914 = vmatpush.bf16.msra.mxu0 %v1221
    %1915 = vmatpush.bf16.msra.mxu0 %v1219
    %1916 = vmatpush.bf16.msra.mxu0 %v1217
    %1917 = vmatpush.bf16.msra.mxu0 %v1215
    %1918 = vmatpush.bf16.msra.mxu0 %v1213
    %1919 = vmatpush.bf16.msra.mxu0 %v1211
    %1920 = vmatpush.bf16.msra.mxu0 %v1209
    %1921 = vmatpush.bf16.msra.mxu0 %v1207
    %1922 = vmatmul.bf16.gmra.mxu0 %v100
    %v1923 = vpop.f32.mrf.mxu0
    %v1924 = vadd.f32 %v1911, %v1923
    %v1925 = vpop.f32.mrf.mxu0
    %1926 = vdwg.mxu0
    %1927 = vmatpush.bf16.msra.mxu0 %v1237
    %1928 = vmatpush.bf16.msra.mxu0 %v1235
    %1929 = vmatpush.bf16.msra.mxu0 %v1233
    %1930 = vmatpush.bf16.msra.mxu0 %v1231
    %1931 = vmatpush.bf16.msra.mxu0 %v1229
    %1932 = vmatpush.bf16.msra.mxu0 %v1227
    %1933 = vmatpush.bf16.msra.mxu0 %v1225
    %1934 = vmatpush.bf16.msra.mxu0 %v1223
    %1935 = vmatmul.bf16.gmra.mxu0 %v101
    %v1936 = vpop.f32.mrf.mxu0
    %v1937 = vadd.f32 %v1924, %v1936
    %v1938 = vpop.f32.mrf.mxu0
    %1939 = vdwg.mxu0
    %1940 = vmatpush.bf16.msra.mxu0 %v1253
    %1941 = vmatpush.bf16.msra.mxu0 %v1251
    %1942 = vmatpush.bf16.msra.mxu0 %v1249
    %1943 = vmatpush.bf16.msra.mxu0 %v1247
    %1944 = vmatpush.bf16.msra.mxu0 %v1245
    %1945 = vmatpush.bf16.msra.mxu0 %v1243
    %1946 = vmatpush.bf16.msra.mxu0 %v1241
    %1947 = vmatpush.bf16.msra.mxu0 %v1239
    %1948 = vmatmul.bf16.gmra.mxu0 %v102
    %v1949 = vpop.f32.mrf.mxu0
    %v1950 = vadd.f32 %v1937, %v1949
    %v1951 = vpop.f32.mrf.mxu0
    %1952 = vdwg.mxu0
    %1953 = vmatpush.bf16.msra.mxu0 %v1269
    %1954 = vmatpush.bf16.msra.mxu0 %v1267
    %1955 = vmatpush.bf16.msra.mxu0 %v1265
    %1956 = vmatpush.bf16.msra.mxu0 %v1263
    %1957 = vmatpush.bf16.msra.mxu0 %v1261
    %1958 = vmatpush.bf16.msra.mxu0 %v1259
    %1959 = vmatpush.bf16.msra.mxu0 %v1257
    %1960 = vmatpush.bf16.msra.mxu0 %v1255
    %1961 = vmatmul.bf16.gmra.mxu0 %v103
    %v1962 = vpop.f32.mrf.mxu0
    %v1963 = vadd.f32 %v1950, %v1962
    %v1964 = vpop.f32.mrf.mxu0
    %1965 = vdwg.mxu0
    %1966 = vmatpush.bf16.msra.mxu0 %v1285
    %1967 = vmatpush.bf16.msra.mxu0 %v1283
    %1968 = vmatpush.bf16.msra.mxu0 %v1281
    %1969 = vmatpush.bf16.msra.mxu0 %v1279
    %1970 = vmatpush.bf16.msra.mxu0 %v1277
    %1971 = vmatpush.bf16.msra.mxu0 %v1275
    %1972 = vmatpush.bf16.msra.mxu0 %v1273
    %1973 = vmatpush.bf16.msra.mxu0 %v1271
    %1974 = vmatmul.bf16.gmra.mxu0 %v104
    %v1975 = vpop.f32.mrf.mxu0
    %v1976 = vadd.f32 %v1963, %v1975
    %v1977 = vpop.f32.mrf.mxu0
    %1978 = vdwg.mxu0
    %1979 = vmatpush.bf16.msra.mxu0 %v1301
    %1980 = vmatpush.bf16.msra.mxu0 %v1299
    %1981 = vmatpush.bf16.msra.mxu0 %v1297
    %1982 = vmatpush.bf16.msra.mxu0 %v1295
    %1983 = vmatpush.bf16.msra.mxu0 %v1293
    %1984 = vmatpush.bf16.msra.mxu0 %v1291
    %1985 = vmatpush.bf16.msra.mxu0 %v1289
    %1986 = vmatpush.bf16.msra.mxu0 %v1287
    %1987 = vmatmul.bf16.gmra.mxu0 %v105
    %v1988 = vpop.f32.mrf.mxu0
    %v1989 = vadd.f32 %v1976, %v1988
    %v1990 = vpop.f32.mrf.mxu0
    %1991 = vdwg.mxu0
    %1992 = vmatpush.bf16.msra.mxu0 %v1317
    %1993 = vmatpush.bf16.msra.mxu0 %v1315
    %1994 = vmatpush.bf16.msra.mxu0 %v1313
    %1995 = vmatpush.bf16.msra.mxu0 %v1311
    %1996 = vmatpush.bf16.msra.mxu0 %v1309
    %1997 = vmatpush.bf16.msra.mxu0 %v1307
    %1998 = vmatpush.bf16.msra.mxu0 %v1305
    %1999 = vmatpush.bf16.msra.mxu0 %v1303
    %2000 = vmatmul.bf16.gmra.mxu0 %v106
    %v2001 = vpop.f32.mrf.mxu0
    %v2002 = vadd.f32 %v1989, %v2001
    %v2003 = vpop.f32.mrf.mxu0
    %2004 = vdwg.mxu0
    %2005 = vmatpush.bf16.msra.mxu0 %v1333
    %2006 = vmatpush.bf16.msra.mxu0 %v1331
    %2007 = vmatpush.bf16.msra.mxu0 %v1329
    %2008 = vmatpush.bf16.msra.mxu0 %v1327
    %2009 = vmatpush.bf16.msra.mxu0 %v1325
    %2010 = vmatpush.bf16.msra.mxu0 %v1323
    %2011 = vmatpush.bf16.msra.mxu0 %v1321
    %2012 = vmatpush.bf16.msra.mxu0 %v1319
    %2013 = vmatmul.bf16.gmra.mxu0 %v107
    %v2014 = vpop.f32.mrf.mxu0
    %v2015 = vadd.f32 %v2002, %v2014
    %v2016 = vpop.f32.mrf.mxu0
    %2017 = vdwg.mxu0
    %2018 = vmatpush.bf16.msra.mxu0 %v1349
    %2019 = vmatpush.bf16.msra.mxu0 %v1347
    %2020 = vmatpush.bf16.msra.mxu0 %v1345
    %2021 = vmatpush.bf16.msra.mxu0 %v1343
    %2022 = vmatpush.bf16.msra.mxu0 %v1341
    %2023 = vmatpush.bf16.msra.mxu0 %v1339
    %2024 = vmatpush.bf16.msra.mxu0 %v1337
    %2025 = vmatpush.bf16.msra.mxu0 %v1335
    %2026 = vmatmul.bf16.gmra.mxu0 %v108
    %v2027 = vpop.f32.mrf.mxu0
    %v2028 = vadd.f32 %v2015, %v2027
    %v2029 = vpop.f32.mrf.mxu0
    %2030 = vdwg.mxu0
    %2031 = vmatpush.bf16.msra.mxu0 %v1365
    %2032 = vmatpush.bf16.msra.mxu0 %v1363
    %2033 = vmatpush.bf16.msra.mxu0 %v1361
    %2034 = vmatpush.bf16.msra.mxu0 %v1359
    %2035 = vmatpush.bf16.msra.mxu0 %v1357
    %2036 = vmatpush.bf16.msra.mxu0 %v1355
    %2037 = vmatpush.bf16.msra.mxu0 %v1353
    %2038 = vmatpush.bf16.msra.mxu0 %v1351
    %2039 = vmatmul.bf16.gmra.mxu0 %v109
    %v2040 = vpop.f32.mrf.mxu0
    %v2041 = vadd.f32 %v2028, %v2040
    %v2042 = vpop.f32.mrf.mxu0
    %2043 = vdwg.mxu0
    %2044 = vmatpush.bf16.msra.mxu0 %v1381
    %2045 = vmatpush.bf16.msra.mxu0 %v1379
    %2046 = vmatpush.bf16.msra.mxu0 %v1377
    %2047 = vmatpush.bf16.msra.mxu0 %v1375
    %2048 = vmatpush.bf16.msra.mxu0 %v1373
    %2049 = vmatpush.bf16.msra.mxu0 %v1371
    %2050 = vmatpush.bf16.msra.mxu0 %v1369
    %2051 = vmatpush.bf16.msra.mxu0 %v1367
    %2052 = vmatmul.bf16.gmra.mxu0 %v110
    %v2053 = vpop.f32.mrf.mxu0
    %v2054 = vadd.f32 %v2041, %v2053
    %v2055 = vpop.f32.mrf.mxu0
    %2056 = vdwg.mxu0
    %2057 = vmatpush.bf16.msra.mxu0 %v1397
    %2058 = vmatpush.bf16.msra.mxu0 %v1395
    %2059 = vmatpush.bf16.msra.mxu0 %v1393
    %2060 = vmatpush.bf16.msra.mxu0 %v1391
    %2061 = vmatpush.bf16.msra.mxu0 %v1389
    %2062 = vmatpush.bf16.msra.mxu0 %v1387
    %2063 = vmatpush.bf16.msra.mxu0 %v1385
    %2064 = vmatpush.bf16.msra.mxu0 %v1383
    %2065 = vmatmul.bf16.gmra.mxu0 %v111
    %v2066 = vpop.f32.mrf.mxu0
    %v2067 = vadd.f32 %v2054, %v2066
    %v2068 = vpop.f32.mrf.mxu0
    %2069 = vdwg.mxu0
    %v2070 = vmax.f32 %v1859, 0.0
    %v2071 = vmax.f32 %v2067, 0.0
    %v2072 = vpack.c.bf16 %v2070, %v2070
    %v2073 = vpack.c.bf16 %v2071, %v2071
    %v2074 = vld [vmem:[#allocation8] sm:$0xf]
    %v2075 = vld [vmem:[#allocation8 + $0x4] sm:$0xf]
    %v2076 = vld [vmem:[#allocation8 + $0x8] sm:$0xf]
    %v2077 = vld [vmem:[#allocation8 + $0xc] sm:$0xf]
    %v2078 = vld [vmem:[#allocation8 + $0x10] sm:$0xf]
    %v2079 = vld [vmem:[#allocation8 + $0x14] sm:$0xf]
    %v2080 = vld [vmem:[#allocation8 + $0x18] sm:$0xf]
    %v2081 = vld [vmem:[#allocation8 + $0x1c] sm:$0xf]
    %v2082 = vld [vmem:[#allocation8 + $0x20] sm:$0xf]
    %v2083 = vld [vmem:[#allocation8 + $0x24] sm:$0xf]
    %v2084 = vld [vmem:[#allocation8 + $0x28] sm:$0xf]
    %v2085 = vld [vmem:[#allocation8 + $0x2c] sm:$0xf]
    %v2086 = vld [vmem:[#allocation8 + $0x30] sm:$0xf]
    %v2087 = vld [vmem:[#allocation8 + $0x34] sm:$0xf]
    %v2088 = vld [vmem:[#allocation8 + $0x38] sm:$0xf]
    %v2089 = vld [vmem:[#allocation8 + $0x3c] sm:$0xf]
    %v2090 = vld [vmem:[#allocation8 + $0x40] sm:$0xf]
    %v2091 = vld [vmem:[#allocation8 + $0x44] sm:$0xf]
    %v2092 = vld [vmem:[#allocation8 + $0x48] sm:$0xf]
    %v2093 = vld [vmem:[#allocation8 + $0x4c] sm:$0xf]
    %v2094 = vld [vmem:[#allocation8 + $0x50] sm:$0xf]
    %v2095 = vld [vmem:[#allocation8 + $0x54] sm:$0xf]
    %v2096 = vld [vmem:[#allocation8 + $0x58] sm:$0xf]
    %v2097 = vld [vmem:[#allocation8 + $0x5c] sm:$0xf]
    %v2098 = vld [vmem:[#allocation8 + $0x60] sm:$0xf]
    %v2099 = vld [vmem:[#allocation8 + $0x64] sm:$0xf]
    %v2100 = vld [vmem:[#allocation8 + $0x68] sm:$0xf]
    %v2101 = vld [vmem:[#allocation8 + $0x6c] sm:$0xf]
    %v2102 = vld [vmem:[#allocation8 + $0x70] sm:$0xf]
    %v2103 = vld [vmem:[#allocation8 + $0x74] sm:$0xf]
    %v2104 = vld [vmem:[#allocation8 + $0x78] sm:$0xf]
    %v2105 = vld [vmem:[#allocation8 + $0x7c] sm:$0xf]
    %v2106 = vld [vmem:[%s4] sm:$0x1]
    %v2108 = vperm.slane %v2106, 0
    %v2142 = vunpack.c.l.b16 %v2074
    %v2143 = vunpack.c.l.b16 %v2075
    %v2144 = vunpack.c.l.b16 %v2076
    %v2145 = vunpack.c.l.b16 %v2077
    %v2146 = vunpack.c.l.b16 %v2078
    %v2147 = vunpack.c.l.b16 %v2079
    %v2148 = vunpack.c.l.b16 %v2080
    %v2149 = vunpack.c.l.b16 %v2081
    %v2150 = vunpack.c.l.b16 %v2082
    %v2151 = vunpack.c.l.b16 %v2083
    %v2152 = vunpack.c.l.b16 %v2084
    %v2153 = vunpack.c.l.b16 %v2085
    %v2154 = vunpack.c.l.b16 %v2086
    %v2155 = vunpack.c.l.b16 %v2087
    %v2156 = vunpack.c.l.b16 %v2088
    %v2157 = vunpack.c.l.b16 %v2089
    %v2158 = vunpack.c.l.b16 %v2090
    %v2159 = vunpack.c.l.b16 %v2091
    %v2160 = vunpack.c.l.b16 %v2092
    %v2161 = vunpack.c.l.b16 %v2093
    %v2162 = vunpack.c.l.b16 %v2094
    %v2163 = vunpack.c.l.b16 %v2095
    %v2164 = vunpack.c.l.b16 %v2096
    %v2165 = vunpack.c.l.b16 %v2097
    %v2166 = vunpack.c.l.b16 %v2098
    %v2167 = vunpack.c.l.b16 %v2099
    %v2168 = vunpack.c.l.b16 %v2100
    %v2169 = vunpack.c.l.b16 %v2101
    %v2170 = vunpack.c.l.b16 %v2102
    %v2171 = vunpack.c.l.b16 %v2103
    %v2172 = vunpack.c.l.b16 %v2104
    %v2173 = vunpack.c.l.b16 %v2105
    %v2174 = vpack.c.b16 %v2143, %v2142
    %v2175 = vpack.c.b16 %v2145, %v2144
    %v2176 = vpack.c.b16 %v2147, %v2146
    %v2177 = vpack.c.b16 %v2149, %v2148
    %v2178 = vpack.c.b16 %v2151, %v2150
    %v2179 = vpack.c.b16 %v2153, %v2152
    %v2180 = vpack.c.b16 %v2155, %v2154
    %v2181 = vpack.c.b16 %v2157, %v2156
    %v2182 = vpack.c.b16 %v2159, %v2158
    %v2183 = vpack.c.b16 %v2161, %v2160
    %v2184 = vpack.c.b16 %v2163, %v2162
    %v2185 = vpack.c.b16 %v2165, %v2164
    %v2186 = vpack.c.b16 %v2167, %v2166
    %v2187 = vpack.c.b16 %v2169, %v2168
    %v2188 = vpack.c.b16 %v2171, %v2170
    %v2189 = vpack.c.b16 %v2173, %v2172
    %2206 = vmatpush.bf16.msra.mxu0 %v2181
    %2207 = vmatpush.bf16.msra.mxu0 %v2180
    %2208 = vmatpush.bf16.msra.mxu0 %v2179
    %2209 = vmatpush.bf16.msra.mxu0 %v2178
    %2210 = vmatpush.bf16.msra.mxu0 %v2177
    %2211 = vmatpush.bf16.msra.mxu0 %v2176
    %2212 = vmatpush.bf16.msra.mxu0 %v2175
    %2213 = vmatpush.bf16.msra.mxu0 %v2174
    %2214 = vmatmul.bf16.gmra.mxu0 %v2072
    %v2215 = vpop.f32.mrf.mxu0
    %v2216 = vadd.f32 %v2108, %v2215
    %v2217 = vpop.f32.mrf.mxu0
    %2218 = vdwg.mxu0
    %2219 = vmatpush.bf16.msra.mxu0 %v2189
    %2220 = vmatpush.bf16.msra.mxu0 %v2188
    %2221 = vmatpush.bf16.msra.mxu0 %v2187
    %2222 = vmatpush.bf16.msra.mxu0 %v2186
    %2223 = vmatpush.bf16.msra.mxu0 %v2185
    %2224 = vmatpush.bf16.msra.mxu0 %v2184
    %2225 = vmatpush.bf16.msra.mxu0 %v2183
    %2226 = vmatpush.bf16.msra.mxu0 %v2182
    %2227 = vmatmul.bf16.gmra.mxu0 %v2073
    %v2228 = vpop.f32.mrf.mxu0
    %v2229 = vadd.f32 %v2216, %v2228
    %v2230 = vpop.f32.mrf.mxu0
    %2231 = vdwg.mxu0
    %2232 = vst [vmem:[#allocation10] sm:$0xff] %v2229
    // Predicated region
    $region38: #{tpu_custom_call.1} parent=1 // pred_check
      _
    $region39: #{tpu_custom_call.1} parent=1 // pred_check_branch
      %2234 = sbr.rel (0) target = $region41
    $region40: #{tpu_custom_call.1} parent=1 // pred_region
      %2236 = vsyncadd [#allocation4], 0
      %s2238 = sshll.u32 [#allocation10], 4
      %s2239 = int_to_ptr.vmem [resolvable:$true] %s2238
      %s2240 = sshll.u32 %s5, 4
      %s2241 = int_to_ptr.hbm [resolvable:$true] %s2240
      %2243 = dma.vmem_to_hbm [thread:$0]  %s2239, 128, %s2241, [#allocation4]
    $region41: #{tpu_custom_call.1} parent=1 // pred_fallthru
      _
    // Predicated region
    $region42: #{tpu_custom_call.1} parent=1 // pred_check
      _
    $region43: #{tpu_custom_call.1} parent=1 // pred_check_branch
      %2245 = sbr.rel (0) target = $region45
    $region44: #{tpu_custom_call.1} parent=1 // pred_region
      %2247 = dma.done [#allocation4], 128
    $region45: #{tpu_custom_call.1} parent=1 // pred_fallthru
      _
    %2248 = vsyncpa [#allocation3], 1
    %2249 = vsyncpa [#allocation6], 1
    %2250 = vsyncpa [#allocation9], 1
    %2251 = vsyncpa [#allocation4], 1

</llo_original>
